<compile_context>
chip_gen: v7x
topology: tpu7x:2x2x1
jax: 0.10.0
libtpu: 0.0.40
codegen_flags: <defaults>
</compile_context>

<pallas_src>
import jax
import jax.numpy as jnp
from jax import lax
from jax.experimental import pallas as pl
from jax.experimental.pallas import tpu as pltpu


# ----------------------------------------------------------------------------- kernel
def _make_kernel(*, scale, Wp, Cin, Cex, Cout, TH, halo, n_dw,
                 mm_dtype, act_dtype, n_h_tiles, nchw_out):
    Hc = TH + 2 * halo          # extended (haloed) pooled rows held per tile
    R1 = Hc - 2                 # rows produced by the 3x3 conv (extended for the dwconvs)

    def pool(xb):
        """Max-pool a (rows*scale, Wp, scale*Cin) block -> (rows, Wp, Cin)."""
        m = xb[:, :, 0:Cin]
        for dx in range(1, scale):                         # W pooling phases: lane slices
            m = jnp.maximum(m, xb[:, :, dx * Cin:(dx + 1) * Cin])
        rows = xb.shape[0] // scale
        m = m.reshape(rows, scale, Wp, Cin)                # H pooling phases: outer split
        p = m[:, 0]
        for dy in range(1, scale):
            p = jnp.maximum(p, m[:, dy])
        return p

    def kernel(x_main, x_top, x_bot, w1, sb1, *rest):
        dwsb = rest[:n_dw]                                 # each (11, Cex): 9 taps + BN s,b
        w3, sb3, o_ref, padA, colA, padB = rest[n_dw:]
        ht = pl.program_id(1)

        # ---- MaxPool2d(scale): 3 pooled writes into the zero-bordered scratch ---
        zcol = jnp.zeros((Hc, 1, Cin), act_dtype)
        padA[:, 0:1, :] = zcol                             # W border columns only
        padA[:, Wp + 1:Wp + 2, :] = zcol
        padA[halo:halo + TH, 1:Wp + 1, :] = pool(x_main[0])
        padA[0:halo, 1:Wp + 1, :] = pool(x_top[0])         # merged top halo block
        padA[halo + TH:Hc, 1:Wp + 1, :] = pool(x_bot[0])   # merged bottom halo block

        # halo rows outside the pooled image are exactly the conv's zero padding
        @pl.when(ht == 0)
        def _():
            padA[0:halo, :, :] = jnp.zeros((halo, Wp + 2, Cin), act_dtype)

        @pl.when(ht == n_h_tiles - 1)
        def _():
            padA[Hc - halo:Hc, :, :] = jnp.zeros((halo, Wp + 2, Cin), act_dtype)

        # ---- conv3x3 (pad=1) + BN + ReLU: one im2col matmul on the MXU ----------
        for k in range(9):
            dy, dx = divmod(k, 3)
            patch = padA[dy:dy + R1, dx:dx + Wp, :]                   # (R1, Wp, Cin)
            colA[:, k * Cin:(k + 1) * Cin] = patch.reshape(R1 * Wp, Cin)
        y = jnp.dot(colA[...], w1[...],
                    preferred_element_type=jnp.float32)               # (R1*Wp, Cex) f32
        y = jnp.maximum(y * sb1[0:1, :] + sb1[1:2, :], 0.0)
        y = y.reshape(R1, Wp, Cex)

        # ---- depthwise conv3x3 (pad=1) + BN + ReLU stage(s) on the VPU -----------
        zb = jnp.zeros((R1, 1, Cex), jnp.float32)
        padB[:, 0:1, :] = zb                                          # W border only
        padB[:, Wp + 1:Wp + 2, :] = zb
        R = R1
        for si in range(n_dw):
            wsb = dwsb[si]
            padB[0:R, 1:Wp + 1, :] = y
            # border-only zero padding: out-of-image rows exist only on edge tiles
            m = n_dw - si

            @pl.when(ht == 0)
            def _():
                padB[0:m, :, :] = jnp.zeros((m, Wp + 2, Cex), jnp.float32)

            @pl.when(ht == n_h_tiles - 1)
            def _():
                padB[R - m:R, :, :] = jnp.zeros((m, Wp + 2, Cex), jnp.float32)

            Ro = R - 2
            acc = padB[0:Ro, 0:Wp, :] * wsb[0:1, :]
            for k in range(1, 9):
                dy, dx = divmod(k, 3)
                acc = acc + padB[dy:dy + Ro, dx:dx + Wp, :] * wsb[k:k + 1, :]
            y = jnp.maximum(acc * wsb[9:10, :] + wsb[10:11, :], 0.0)  # (Ro, Wp, Cex)
            R = Ro

        # ---- conv1x1 + BN + ReLU: one matmul on the MXU --------------------------
        ym = y.reshape(TH * Wp, Cex).astype(mm_dtype)                 # (TH*Wp, Cex)
        if nchw_out:
            # w3 is (Cout, Cex); contract both minor dims (q@k^T pattern) -> (Cout, TH*Wp)
            o = lax.dot_general(w3[...], ym, (((1,), (1,)), ((), ())),
                                preferred_element_type=jnp.float32)
            o = jnp.maximum(o * sb3[:, 0:1] + sb3[:, 1:2], 0.0)
            o_ref[...] = o.reshape(1, Cout, TH * Wp)                  # lane-dense store
        else:
            o = jnp.dot(ym, w3[...], preferred_element_type=jnp.float32)
            o = jnp.maximum(o * sb3[0:1, :] + sb3[1:2, :], 0.0)
            o_ref[...] = o.reshape(1, TH, Wp, Cout)

    return kernel


# ----------------------------------------------------------------------------- wrapper
def _padded_bytes(shape, itemsize):
    """VMEM footprint estimate with (8,128) register-tile padding on the minor dims."""
    s = [int(d) for d in shape]
    s[-1] = -(-s[-1] // 128) * 128
    if len(s) >= 2:
        s[-2] = -(-s[-2] // 8) * 8
    n = 1
    for d in s:
        n *= d
    return n * itemsize


def _vmem_budget_bytes(vmem_limit_bytes):
    if vmem_limit_bytes is not None:
        return int(vmem_limit_bytes)
    try:
        phys = int(pltpu.get_tpu_info().vmem_capacity_bytes)
    except Exception:
        phys = 64 * 1024 * 1024           # conservative fallback (v7x per-core VMEM)
    # ~70% of physical: ~45 MiB on v7x (64 MiB), ~90 MiB on v5e/v6e (128 MiB).
    return min(int(0.70 * phys), 100 * 1024 * 1024)


def dsample_forward(x_nchw, params, scale=2, *, max_rows_per_tile=None,
                    mm_dtype=jnp.bfloat16, vmem_limit_bytes=None):
    """x_nchw: (N, Cin, H, W) f32.  Returns (N, Cout, H//scale, W//scale) f32."""
    assert scale in (2, 4)
    N, Cin, H, W = x_nchw.shape
    assert H % scale == 0 and W % scale == 0
    Hp, Wp = H // scale, W // scale
    n_dw = 1 if scale == 2 else 2
    halo = 1 + n_dw                     # pooled rows of context needed by conv3x3 + dwconvs
    Cex = params["sb1"].shape[-1]
    Cout = params["sb3"].shape[-1]
    sC = scale * Cin
    assert params["w1"].shape == (9 * Cin, Cex)

    act_dtype = mm_dtype
    in_isz = jnp.dtype(act_dtype).itemsize

    # layout glue: one NCHW->NHWC transpose (interface), then a *free* reshape so the
    # kernel extracts pooling phases with plain lane slices.  bf16 staging (mm_dtype=bf16)
    # halves the dominant HBM->VMEM input stream.
    # TODO(synk): keeping activations NHWC across the whole model removes the transposes.
    x = jnp.transpose(x_nchw, (0, 2, 3, 1)).astype(act_dtype).reshape(N, H, Wp, sC)

    # ---- generation-aware VMEM budget -> largest H tile that fits ----------------
    vmem_limit_bytes = _vmem_budget_bytes(vmem_limit_bytes)
    weight_bytes = (_padded_bytes((9 * Cin, Cex), in_isz)      # w1
                    + _padded_bytes((2, Cex), 4)               # sb1
                    + n_dw * _padded_bytes((11, Cex), 4)       # dwsb_i
                    + _padded_bytes((Cex, Cout), in_isz)       # w3
                    + _padded_bytes((2, Cout), 4))             # sb3

    def est(th):
        hc, r1 = th + 2 * halo, th + 2 * n_dw
        e = 2 * _padded_bytes((th * scale, Wp, sC), in_isz)            # main input x2 bufs
        e += 4 * _padded_bytes((halo * scale, Wp, sC), in_isz)         # top+bottom halo x2
        e += 2 * max(_padded_bytes((Cout, th * Wp), 4),
                     _padded_bytes((th, Wp, Cout), 4))                 # output x2 bufs
        e += _padded_bytes((hc, Wp + 2, Cin), in_isz)                  # padA
        e += 2 * _padded_bytes((r1 * Wp, 9 * Cin), in_isz)             # colA scratch + load
        e += _padded_bytes((r1, Wp + 2, Cex), 4)                       # padB
        e += 3 * _padded_bytes((r1 * Wp, Cex), 4)                      # live f32 temporaries
        e += 2 * weight_bytes                                          # double-buffered consts
        return e

    cap = Hp if max_rows_per_tile is None else max(1, min(int(max_rows_per_tile), Hp))
    # multi-tile halo merging needs TH % halo == 0; TH == Hp (single tile) is always valid.
    # TODO(synk): ragged (masked) last tile for awkward Hp instead of the TH=Hp fallback.
    cands = [d for d in range(1, Hp + 1)
             if Hp % d == 0 and (d == Hp or d % halo == 0)]
    capped = [d for d in cands if d <= cap] or [min(cands)]
    fitting = [d for d in capped if est(d) <= vmem_limit_bytes]
    TH = max(fitting) if fitting else min(capped)
    n_h_tiles = Hp // TH
    Hc = TH + 2 * halo
    R1 = TH + 2 * n_dw

    # lane-dense NCHW output: only when Cout is narrow and the tile is lane-aligned
    nchw_out = (Cout < 128) and (n_h_tiles == 1 or (TH * Wp) % 128 == 0)

    # ---- packed weights -----------------------------------------------------------
    w1 = params["w1"].astype(mm_dtype)
    sb1 = params["sb1"]
    dwsb = [params[f"dwsb{i + 1}"] for i in range(n_dw)]
    if nchw_out:
        w3k = params["w3"].T.astype(mm_dtype)     # (Cout, Cex)
        sb3k = params["sb3"].T                    # (Cout, 2)
    else:
        w3k = params["w3"].astype(mm_dtype)       # (Cex, Cout)
        sb3k = params["sb3"]                      # (2, Cout)
    weights = [w1, sb1] + dwsb + [w3k, sb3k]

    # ---- BlockSpecs -----------------------------------------------------------------
    THb = TH // halo                              # valid whenever n_h_tiles > 1
    hmax = max(Hp // halo - 1, 0)

    def main_map(n, h):
        return (n, h, 0, 0)

    def top_map(n, h):
        return (n, jnp.maximum(jnp.minimum(h * THb - 1, hmax), 0), 0, 0)

    def bot_map(n, h):
        return (n, jnp.maximum(jnp.minimum(h * THb + THb, hmax), 0), 0, 0)

    def const_spec(a):
        nd = a.ndim
        return pl.BlockSpec(a.shape, lambda n, h, _nd=nd: (0,) * _nd)

    in_specs = [pl.BlockSpec((1, TH * scale, Wp, sC), main_map),
                pl.BlockSpec((1, halo * scale, Wp, sC), top_map),
                pl.BlockSpec((1, halo * scale, Wp, sC), bot_map)]
    in_specs += [const_spec(w) for w in weights]   # small weights stay fully VMEM-resident
    inputs = [x, x, x] + weights

    if nchw_out:
        out_shape = jax.ShapeDtypeStruct((N, Cout, Hp * Wp), jnp.float32)
        out_spec = pl.BlockSpec((1, Cout, TH * Wp), lambda n, h: (n, 0, h))
    else:
        out_shape = jax.ShapeDtypeStruct((N, Hp, Wp, Cout), jnp.float32)
        out_spec = pl.BlockSpec((1, TH, Wp, Cout), lambda n, h: (n, h, 0, 0))

    kernel = _make_kernel(scale=scale, Wp=Wp, Cin=Cin, Cex=Cex, Cout=Cout, TH=TH,
                          halo=halo, n_dw=n_dw, mm_dtype=mm_dtype, act_dtype=act_dtype,
                          n_h_tiles=n_h_tiles, nchw_out=nchw_out)

    out = pl.pallas_call(
        kernel,
        out_shape=out_shape,
        grid=(N, n_h_tiles),
        in_specs=in_specs,
        out_specs=out_spec,
        scratch_shapes=[
            pltpu.VMEM((Hc, Wp + 2, Cin), act_dtype),     # padded pooled tile (mm dtype)
            pltpu.VMEM((R1 * Wp, 9 * Cin), act_dtype),    # im2col staging (mm dtype)
            pltpu.VMEM((R1, Wp + 2, Cex), jnp.float32),   # padded dwconv input
        ],
        compiler_params=pltpu.CompilerParams(
            dimension_semantics=("parallel", "parallel"),  # v7x: both TCs split the grid
            vmem_limit_bytes=vmem_limit_bytes),
    )(*inputs)

    if nchw_out:
        return out.reshape(N, Cout, Hp, Wp)                # already NCHW: no transpose
    return jnp.transpose(out, (0, 3, 1, 2))


# ----------------------------------------------------------------------------- params
def init_raw_params(key, Cin, Cex, Cout):
    ks = jax.random.split(key, 12)

    def bn_params(k, C):
        k1, k2, k3, k4 = jax.random.split(k, 4)
        g = jax.random.uniform(k1, (C,), jnp.float32, 0.5, 1.5)
        be = 0.1 * jax.random.normal(k2, (C,), jnp.float32)
        mu = 0.1 * jax.random.normal(k3, (C,), jnp.float32)
        var = jax.random.uniform(k4, (C,), jnp.float32, 0.5, 1.5)
        return (g, be, mu, var)

    return {
        "w_in": 0.3 * jax.random.normal(ks[0], (Cex, Cin, 3, 3), jnp.float32),
        "b_in": 0.1 * jax.random.normal(ks[1], (Cex,), jnp.float32),
        "bn_in": bn_params(ks[2], Cex),
        "w_dw1": 0.3 * jax.random.normal(ks[3], (Cex, 1, 3, 3), jnp.float32),
        "b_dw1": 0.1 * jax.random.normal(ks[4], (Cex,), jnp.float32),
        "bn_dw1": bn_params(ks[5], Cex),
        "w_dw2": 0.3 * jax.random.normal(ks[6], (Cex, 1, 3, 3), jnp.float32),
        "b_dw2": 0.1 * jax.random.normal(ks[7], (Cex,), jnp.float32),
        "bn_dw2": bn_params(ks[8], Cex),
        "w_out": 0.3 * jax.random.normal(ks[9], (Cout, Cex, 1, 1), jnp.float32),
        "b_out": 0.1 * jax.random.normal(ks[10], (Cout,), jnp.float32),
        "bn_out": bn_params(ks[11], Cout),
    }


def fold_params(raw, eps=1e-5):
    """Fold conv bias + eval-mode BatchNorm into packed per-channel (scale, bias)."""
    def fold(b, bnp):
        g, be, mu, var = bnp
        s = g / jnp.sqrt(var + eps)
        return s, (b - mu) * s + be

    s1, b1 = fold(raw["b_in"], raw["bn_in"])
    sd1, bd1 = fold(raw["b_dw1"], raw["bn_dw1"])
    sd2, bd2 = fold(raw["b_dw2"], raw["bn_dw2"])
    s3, b3 = fold(raw["b_out"], raw["bn_out"])

    Cin = raw["w_in"].shape[1]
    # im2col layout: row index = (dy*3+dx)*Cin + c
    w1 = jnp.transpose(raw["w_in"], (2, 3, 1, 0)).reshape(9 * Cin, -1)
    dw1 = jnp.transpose(raw["w_dw1"][:, 0], (1, 2, 0)).reshape(9, -1)
    dw2 = jnp.transpose(raw["w_dw2"][:, 0], (1, 2, 0)).reshape(9, -1)
    w3 = raw["w_out"][:, :, 0, 0].T                                    # (Cex, Cout)

    return {
        "w1": w1, "w3": w3,
        "sb1": jnp.stack([s1, b1], axis=0),                            # (2, Cex)
        "sb3": jnp.stack([s3, b3], axis=0),                            # (2, Cout)
        # depthwise stage i: rows 0..8 = taps, row 9 = BN scale, row 10 = BN bias
        "dwsb1": jnp.concatenate([dw1, sd1[None, :], bd1[None, :]], axis=0),
        "dwsb2": jnp.concatenate([dw2, sd2[None, :], bd2[None, :]], axis=0),
    }


# ----------------------------------------------------------------------------- pure-JAX reference
def ref_forward(x, raw, scale, eps=1e-5):
    def bn(y, bnp):
        g, be, mu, var = bnp
        return (g[None, :, None, None] * (y - mu[None, :, None, None])
                / jnp.sqrt(var[None, :, None, None] + eps) + be[None, :, None, None])

    def conv(x, w, b, pad, groups):
        y = lax.conv_general_dilated(
            x, w, window_strides=(1, 1), padding=[(pad, pad), (pad, pad)],
            dimension_numbers=("NCHW", "OIHW", "NCHW"), feature_group_count=groups,
            precision=lax.Precision.HIGHEST)
        return y + b[None, :, None, None]

    Cex = raw["w_in"].shape[0]
    xp = lax.reduce_window(x, -jnp.inf, lax.max,
                           (1, 1, scale, scale), (1, 1, scale, scale), "VALID")
    y = jnp.maximum(bn(conv(xp, raw["w_in"], raw["b_in"], 1, 1), raw["bn_in"]), 0.0)
    y = jnp.maximum(bn(conv(y, raw["w_dw1"], raw["b_dw1"], 1, Cex), raw["bn_dw1"]), 0.0)
    if scale == 4:
        y = jnp.maximum(bn(conv(y, raw["w_dw2"], raw["b_dw2"], 1, Cex), raw["bn_dw2"]), 0.0)
    y = jnp.maximum(bn(conv(y, raw["w_out"], raw["b_out"], 0, 1), raw["bn_out"]), 0.0)
    return y


# ----------------------------------------------------------------------------- main
if __name__ == "__main__":
    Cin, Cex, Cout = 4, 8, 8
    key = jax.random.PRNGKey(0)
    kp, k16, k32, k48 = jax.random.split(key, 4)
    raw = init_raw_params(kp, Cin, Cex, Cout)
    fused = fold_params(raw)

    x16 = jax.random.normal(k16, (2, Cin, 16, 16), jnp.float32)
    x32 = jax.random.normal(k32, (2, Cin, 32, 32), jnp.float32)
    x48 = jax.random.normal(k48, (1, Cin, 48, 16), jnp.float32)

    configs = [
        # (input, scale, matmul/staging dtype, max pooled rows per H-tile)
        (x16, 2, jnp.float32, None),    # single H-tile, NCHW lane-dense output
        (x16, 4, jnp.float32, None),    # single H-tile, two dw stages
        (x32, 2, jnp.float32, 4),       # multi H-tile halo path (NHWC fallback output)
        (x48, 4, jnp.float32, 3),       # multi H-tile halo path, scale=4 (two dw stages)
        (x32, 4, jnp.float32, 4),       # awkward cap -> TH=Hp fallback (single tile)
        (x16, 4, jnp.bfloat16, None),   # bf16 end-to-end staging + MXU operands
        (x32, 2, jnp.bfloat16, 4),      # bf16 + multi H-tile
    ]
    for x, scale, mmdt, cap in configs:
        out = jax.block_until_ready(
            dsample_forward(x, fused, scale=scale, max_rows_per_tile=cap, mm_dtype=mmdt))
        ref = ref_forward(x, raw, scale)
        assert out.shape == ref.shape, (out.shape, ref.shape)
        err = float(jnp.max(jnp.abs(out - ref)))
        ref_max = float(jnp.max(jnp.abs(ref)))
        tol = 2e-2 if mmdt is jnp.float32 else 0.1 * max(1.0, ref_max)
        assert err < tol, f"H={x.shape[2]} scale={scale} dtype={mmdt}: err={err} tol={tol}"

    print("KERNEL_OK")
</pallas_src>

<mosaic_0001>
module attributes {stable_mosaic.version = 11 : i64} {
  func.func @kernel(%arg0: i32, %arg1: i32, %arg2: memref<1x16x8x8xf32, #tpu.memory_space<vmem>>, %arg3: memref<1x4x8x8xf32, #tpu.memory_space<vmem>>, %arg4: memref<1x4x8x8xf32, #tpu.memory_space<vmem>>, %arg5: memref<36x8xf32, #tpu.memory_space<vmem>>, %arg6: memref<2x8xf32, #tpu.memory_space<vmem>>, %arg7: memref<11x8xf32, #tpu.memory_space<vmem>>, %arg8: memref<8x8xf32, #tpu.memory_space<vmem>>, %arg9: memref<8x2xf32, #tpu.memory_space<vmem>>, %arg10: memref<1x8x64xf32, #tpu.memory_space<vmem>>, %arg11: memref<12x10x4xf32, #tpu.memory_space<vmem>>, %arg12: memref<80x36xf32, #tpu.memory_space<vmem>>, %arg13: memref<10x10x8xf32, #tpu.memory_space<vmem>>) attributes {dimension_semantics = [#tpu.dimension_semantics<parallel>, #tpu.dimension_semantics<parallel>], iteration_bounds = array<i64: 2, 1>, scalar_prefetch = 0 : i64, scratch_operands = 3 : i64, tpu.core_type = #tpu.core_type<tc>, window_params = [{transform_indices = @transform_0, window_bounds = array<i64: 1, 16, 8, 8>}, {transform_indices = @transform_1, window_bounds = array<i64: 1, 4, 8, 8>}, {transform_indices = @transform_2, window_bounds = array<i64: 1, 4, 8, 8>}, {pipeline_mode = #tpu.pipeline_mode<synchronous>, transform_indices = @transform_3, window_bounds = array<i64: 36, 8>}, {pipeline_mode = #tpu.pipeline_mode<synchronous>, transform_indices = @transform_4, window_bounds = array<i64: 2, 8>}, {pipeline_mode = #tpu.pipeline_mode<synchronous>, transform_indices = @transform_5, window_bounds = array<i64: 11, 8>}, {pipeline_mode = #tpu.pipeline_mode<synchronous>, transform_indices = @transform_6, window_bounds = array<i64: 8, 8>}, {pipeline_mode = #tpu.pipeline_mode<synchronous>, transform_indices = @transform_7, window_bounds = array<i64: 8, 2>}, {transform_indices = @transform_8, window_bounds = array<i64: 1, 8, 64>}]} {
    %cst = arith.constant 0.000000e+00 : f32
    %0 = vector.broadcast %cst : f32 to vector<12x1x4xf32>
    %c0 = arith.constant 0 : index
    %c0_0 = arith.constant 0 : index
    %c0_1 = arith.constant 0 : index
    %1 = vector.load %arg11[%c0, %c0_0, %c0_1] : memref<12x10x4xf32, #tpu.memory_space<vmem>>, vector<12x1x4xf32>
    tpu.vector_store %arg11[%c0, %c0_0, %c0_1], %0 {strides = array<i32>} : memref<12x10x4xf32, #tpu.memory_space<vmem>>, vector<12x1x4xf32>,
    %c0_2 = arith.constant 0 : index
    %c9 = arith.constant 9 : index
    %c0_3 = arith.constant 0 : index
    %2 = vector.load %arg11[%c0_2, %c9, %c0_3] : memref<12x10x4xf32, #tpu.memory_space<vmem>>, vector<12x1x4xf32>
    tpu.vector_store %arg11[%c0_2, %c9, %c0_3], %0 {strides = array<i32>} : memref<12x10x4xf32, #tpu.memory_space<vmem>>, vector<12x1x4xf32>,
    %c0_4 = arith.constant 0 : index
    %c0_5 = arith.constant 0 : index
    %c0_6 = arith.constant 0 : index
    %c0_7 = arith.constant 0 : index
    %3 = vector.load %arg2[%c0_4, %c0_5, %c0_6, %c0_7] : memref<1x16x8x8xf32, #tpu.memory_space<vmem>>, vector<1x16x8x8xf32>
    %4 = vector.shape_cast %3 : vector<1x16x8x8xf32> to vector<16x8x8xf32>
    %5 = vector.extract_strided_slice %4 {offsets = [0, 0, 0], sizes = [16, 8, 4], strides = [1, 1, 1]} : vector<16x8x8xf32> to vector<16x8x4xf32>
    %6 = vector.extract_strided_slice %4 {offsets = [0, 0, 4], sizes = [16, 8, 4], strides = [1, 1, 1]} : vector<16x8x8xf32> to vector<16x8x4xf32>
    %7 = arith.maximumf %5, %6 : vector<16x8x4xf32>
    %8 = vector.shape_cast %7 : vector<16x8x4xf32> to vector<8x2x8x4xf32>
    %9 = vector.extract_strided_slice %8 {offsets = [0, 0, 0, 0], sizes = [8, 1, 8, 4], strides = [1, 1, 1, 1]} : vector<8x2x8x4xf32> to vector<8x1x8x4xf32>
    %10 = vector.shape_cast %9 : vector<8x1x8x4xf32> to vector<8x8x4xf32>
    %11 = vector.extract_strided_slice %8 {offsets = [0, 1, 0, 0], sizes = [8, 1, 8, 4], strides = [1, 1, 1, 1]} : vector<8x2x8x4xf32> to vector<8x1x8x4xf32>
    %12 = vector.shape_cast %11 : vector<8x1x8x4xf32> to vector<8x8x4xf32>
    %13 = arith.maximumf %10, %12 : vector<8x8x4xf32>
    %c2 = arith.constant 2 : index
    %c1 = arith.constant 1 : index
    %c0_8 = arith.constant 0 : index
    %14 = vector.load %arg11[%c2, %c1, %c0_8] : memref<12x10x4xf32, #tpu.memory_space<vmem>>, vector<8x8x4xf32>
    tpu.vector_store %arg11[%c2, %c1, %c0_8], %13 {strides = array<i32>} : memref<12x10x4xf32, #tpu.memory_space<vmem>>, vector<8x8x4xf32>,
    %c0_9 = arith.constant 0 : index
    %c0_10 = arith.constant 0 : index
    %c0_11 = arith.constant 0 : index
    %c0_12 = arith.constant 0 : index
    %15 = vector.load %arg3[%c0_9, %c0_10, %c0_11, %c0_12] : memref<1x4x8x8xf32, #tpu.memory_space<vmem>>, vector<1x4x8x8xf32>
    %16 = vector.shape_cast %15 : vector<1x4x8x8xf32> to vector<4x8x8xf32>
    %17 = vector.extract_strided_slice %16 {offsets = [0, 0, 0], sizes = [4, 8, 4], strides = [1, 1, 1]} : vector<4x8x8xf32> to vector<4x8x4xf32>
    %18 = vector.extract_strided_slice %16 {offsets = [0, 0, 4], sizes = [4, 8, 4], strides = [1, 1, 1]} : vector<4x8x8xf32> to vector<4x8x4xf32>
    %19 = arith.maximumf %17, %18 : vector<4x8x4xf32>
    %20 = vector.shape_cast %19 : vector<4x8x4xf32> to vector<2x2x8x4xf32>
    %21 = vector.extract_strided_slice %20 {offsets = [0, 0, 0, 0], sizes = [2, 1, 8, 4], strides = [1, 1, 1, 1]} : vector<2x2x8x4xf32> to vector<2x1x8x4xf32>
    %22 = vector.shape_cast %21 : vector<2x1x8x4xf32> to vector<2x8x4xf32>
    %23 = vector.extract_strided_slice %20 {offsets = [0, 1, 0, 0], sizes = [2, 1, 8, 4], strides = [1, 1, 1, 1]} : vector<2x2x8x4xf32> to vector<2x1x8x4xf32>
    %24 = vector.shape_cast %23 : vector<2x1x8x4xf32> to vector<2x8x4xf32>
    %25 = arith.maximumf %22, %24 : vector<2x8x4xf32>
    %c0_13 = arith.constant 0 : index
    %c1_14 = arith.constant 1 : index
    %c0_15 = arith.constant 0 : index
    %26 = vector.load %arg11[%c0_13, %c1_14, %c0_15] : memref<12x10x4xf32, #tpu.memory_space<vmem>>, vector<2x8x4xf32>
    tpu.vector_store %arg11[%c0_13, %c1_14, %c0_15], %25 {strides = array<i32>} : memref<12x10x4xf32, #tpu.memory_space<vmem>>, vector<2x8x4xf32>,
    %c0_16 = arith.constant 0 : index
    %c0_17 = arith.constant 0 : index
    %c0_18 = arith.constant 0 : index
    %c0_19 = arith.constant 0 : index
    %27 = vector.load %arg4[%c0_16, %c0_17, %c0_18, %c0_19] : memref<1x4x8x8xf32, #tpu.memory_space<vmem>>, vector<1x4x8x8xf32>
    %28 = vector.shape_cast %27 : vector<1x4x8x8xf32> to vector<4x8x8xf32>
    %29 = vector.extract_strided_slice %28 {offsets = [0, 0, 0], sizes = [4, 8, 4], strides = [1, 1, 1]} : vector<4x8x8xf32> to vector<4x8x4xf32>
    %30 = vector.extract_strided_slice %28 {offsets = [0, 0, 4], sizes = [4, 8, 4], strides = [1, 1, 1]} : vector<4x8x8xf32> to vector<4x8x4xf32>
    %31 = arith.maximumf %29, %30 : vector<4x8x4xf32>
    %32 = vector.shape_cast %31 : vector<4x8x4xf32> to vector<2x2x8x4xf32>
    %33 = vector.extract_strided_slice %32 {offsets = [0, 0, 0, 0], sizes = [2, 1, 8, 4], strides = [1, 1, 1, 1]} : vector<2x2x8x4xf32> to vector<2x1x8x4xf32>
    %34 = vector.shape_cast %33 : vector<2x1x8x4xf32> to vector<2x8x4xf32>
    %35 = vector.extract_strided_slice %32 {offsets = [0, 1, 0, 0], sizes = [2, 1, 8, 4], strides = [1, 1, 1, 1]} : vector<2x2x8x4xf32> to vector<2x1x8x4xf32>
    %36 = vector.shape_cast %35 : vector<2x1x8x4xf32> to vector<2x8x4xf32>
    %37 = arith.maximumf %34, %36 : vector<2x8x4xf32>
    %c10 = arith.constant 10 : index
    %c1_20 = arith.constant 1 : index
    %c0_21 = arith.constant 0 : index
    %38 = vector.load %arg11[%c10, %c1_20, %c0_21] : memref<12x10x4xf32, #tpu.memory_space<vmem>>, vector<2x8x4xf32>
    tpu.vector_store %arg11[%c10, %c1_20, %c0_21], %37 {strides = array<i32>} : memref<12x10x4xf32, #tpu.memory_space<vmem>>, vector<2x8x4xf32>,
    %c0_i32 = arith.constant 0 : i32
    %39 = arith.cmpi eq, %arg1, %c0_i32 : i32
    %40 = arith.extui %39 : i1 to i32
    %c0_i32_22 = arith.constant 0 : i32
    %41 = arith.cmpi ne, %40, %c0_i32_22 : i32
    scf.if %41 {
      %cst_143 = arith.constant 0.000000e+00 : f32
      %170 = vector.broadcast %cst_143 : f32 to vector<2x10x4xf32>
      %c0_144 = arith.constant 0 : index
      %c0_145 = arith.constant 0 : index
      %c0_146 = arith.constant 0 : index
      %171 = vector.load %arg11[%c0_144, %c0_145, %c0_146] : memref<12x10x4xf32, #tpu.memory_space<vmem>>, vector<2x10x4xf32>
      tpu.vector_store %arg11[%c0_144, %c0_145, %c0_146], %170 {strides = array<i32>} : memref<12x10x4xf32, #tpu.memory_space<vmem>>, vector<2x10x4xf32>,
    } else {
    }
    %c0_i32_23 = arith.constant 0 : i32
    %42 = arith.cmpi eq, %arg1, %c0_i32_23 : i32
    %43 = arith.extui %42 : i1 to i32
    %c0_i32_24 = arith.constant 0 : i32
    %44 = arith.cmpi ne, %43, %c0_i32_24 : i32
    scf.if %44 {
      %cst_143 = arith.constant 0.000000e+00 : f32
      %170 = vector.broadcast %cst_143 : f32 to vector<2x10x4xf32>
      %c10_144 = arith.constant 10 : index
      %c0_145 = arith.constant 0 : index
      %c0_146 = arith.constant 0 : index
      %171 = vector.load %arg11[%c10_144, %c0_145, %c0_146] : memref<12x10x4xf32, #tpu.memory_space<vmem>>, vector<2x10x4xf32>
      tpu.vector_store %arg11[%c10_144, %c0_145, %c0_146], %170 {strides = array<i32>} : memref<12x10x4xf32, #tpu.memory_space<vmem>>, vector<2x10x4xf32>,
    } else {
    }
    %c0_25 = arith.constant 0 : index
    %c0_26 = arith.constant 0 : index
    %c0_27 = arith.constant 0 : index
    %45 = vector.load %arg11[%c0_25, %c0_26, %c0_27] : memref<12x10x4xf32, #tpu.memory_space<vmem>>, vector<10x8x4xf32>
    %46 = vector.shape_cast %45 : vector<10x8x4xf32> to vector<80x4xf32>
    %c0_28 = arith.constant 0 : index
    %c0_29 = arith.constant 0 : index
    %47 = vector.load %arg12[%c0_28, %c0_29] : memref<80x36xf32, #tpu.memory_space<vmem>>, vector<80x4xf32>
    tpu.vector_store %arg12[%c0_28, %c0_29], %46 {strides = array<i32>} : memref<80x36xf32, #tpu.memory_space<vmem>>, vector<80x4xf32>,
    %c0_30 = arith.constant 0 : index
    %c1_31 = arith.constant 1 : index
    %c0_32 = arith.constant 0 : index
    %48 = vector.load %arg11[%c0_30, %c1_31, %c0_32] : memref<12x10x4xf32, #tpu.memory_space<vmem>>, vector<10x8x4xf32>
    %49 = vector.shape_cast %48 : vector<10x8x4xf32> to vector<80x4xf32>
    %c0_33 = arith.constant 0 : index
    %c4 = arith.constant 4 : index
    %50 = vector.load %arg12[%c0_33, %c4] : memref<80x36xf32, #tpu.memory_space<vmem>>, vector<80x4xf32>
    tpu.vector_store %arg12[%c0_33, %c4], %49 {strides = array<i32>} : memref<80x36xf32, #tpu.memory_space<vmem>>, vector<80x4xf32>,
    %c0_34 = arith.constant 0 : index
    %c2_35 = arith.constant 2 : index
    %c0_36 = arith.constant 0 : index
    %51 = vector.load %arg11[%c0_34, %c2_35, %c0_36] : memref<12x10x4xf32, #tpu.memory_space<vmem>>, vector<10x8x4xf32>
    %52 = vector.shape_cast %51 : vector<10x8x4xf32> to vector<80x4xf32>
    %c0_37 = arith.constant 0 : index
    %c8 = arith.constant 8 : index
    %53 = vector.load %arg12[%c0_37, %c8] : memref<80x36xf32, #tpu.memory_space<vmem>>, vector<80x4xf32>
    tpu.vector_store %arg12[%c0_37, %c8], %52 {strides = array<i32>} : memref<80x36xf32, #tpu.memory_space<vmem>>, vector<80x4xf32>,
    %c1_38 = arith.constant 1 : index
    %c0_39 = arith.constant 0 : index
    %c0_40 = arith.constant 0 : index
    %54 = vector.load %arg11[%c1_38, %c0_39, %c0_40] : memref<12x10x4xf32, #tpu.memory_space<vmem>>, vector<10x8x4xf32>
    %55 = vector.shape_cast %54 : vector<10x8x4xf32> to vector<80x4xf32>
    %c0_41 = arith.constant 0 : index
    %c12 = arith.constant 12 : index
    %56 = vector.load %arg12[%c0_41, %c12] : memref<80x36xf32, #tpu.memory_space<vmem>>, vector<80x4xf32>
    tpu.vector_store %arg12[%c0_41, %c12], %55 {strides = array<i32>} : memref<80x36xf32, #tpu.memory_space<vmem>>, vector<80x4xf32>,
    %c1_42 = arith.constant 1 : index
    %c1_43 = arith.constant 1 : index
    %c0_44 = arith.constant 0 : index
    %57 = vector.load %arg11[%c1_42, %c1_43, %c0_44] : memref<12x10x4xf32, #tpu.memory_space<vmem>>, vector<10x8x4xf32>
    %58 = vector.shape_cast %57 : vector<10x8x4xf32> to vector<80x4xf32>
    %c0_45 = arith.constant 0 : index
    %c16 = arith.constant 16 : index
    %59 = vector.load %arg12[%c0_45, %c16] : memref<80x36xf32, #tpu.memory_space<vmem>>, vector<80x4xf32>
    tpu.vector_store %arg12[%c0_45, %c16], %58 {strides = array<i32>} : memref<80x36xf32, #tpu.memory_space<vmem>>, vector<80x4xf32>,
    %c1_46 = arith.constant 1 : index
    %c2_47 = arith.constant 2 : index
    %c0_48 = arith.constant 0 : index
    %60 = vector.load %arg11[%c1_46, %c2_47, %c0_48] : memref<12x10x4xf32, #tpu.memory_space<vmem>>, vector<10x8x4xf32>
    %61 = vector.shape_cast %60 : vector<10x8x4xf32> to vector<80x4xf32>
    %c0_49 = arith.constant 0 : index
    %c20 = arith.constant 20 : index
    %62 = vector.load %arg12[%c0_49, %c20] : memref<80x36xf32, #tpu.memory_space<vmem>>, vector<80x4xf32>
    tpu.vector_store %arg12[%c0_49, %c20], %61 {strides = array<i32>} : memref<80x36xf32, #tpu.memory_space<vmem>>, vector<80x4xf32>,
    %c2_50 = arith.constant 2 : index
    %c0_51 = arith.constant 0 : index
    %c0_52 = arith.constant 0 : index
    %63 = vector.load %arg11[%c2_50, %c0_51, %c0_52] : memref<12x10x4xf32, #tpu.memory_space<vmem>>, vector<10x8x4xf32>
    %64 = vector.shape_cast %63 : vector<10x8x4xf32> to vector<80x4xf32>
    %c0_53 = arith.constant 0 : index
    %c24 = arith.constant 24 : index
    %65 = vector.load %arg12[%c0_53, %c24] : memref<80x36xf32, #tpu.memory_space<vmem>>, vector<80x4xf32>
    tpu.vector_store %arg12[%c0_53, %c24], %64 {strides = array<i32>} : memref<80x36xf32, #tpu.memory_space<vmem>>, vector<80x4xf32>,
    %c2_54 = arith.constant 2 : index
    %c1_55 = arith.constant 1 : index
    %c0_56 = arith.constant 0 : index
    %66 = vector.load %arg11[%c2_54, %c1_55, %c0_56] : memref<12x10x4xf32, #tpu.memory_space<vmem>>, vector<10x8x4xf32>
    %67 = vector.shape_cast %66 : vector<10x8x4xf32> to vector<80x4xf32>
    %c0_57 = arith.constant 0 : index
    %c28 = arith.constant 28 : index
    %68 = vector.load %arg12[%c0_57, %c28] : memref<80x36xf32, #tpu.memory_space<vmem>>, vector<80x4xf32>
    tpu.vector_store %arg12[%c0_57, %c28], %67 {strides = array<i32>} : memref<80x36xf32, #tpu.memory_space<vmem>>, vector<80x4xf32>,
    %c2_58 = arith.constant 2 : index
    %c2_59 = arith.constant 2 : index
    %c0_60 = arith.constant 0 : index
    %69 = vector.load %arg11[%c2_58, %c2_59, %c0_60] : memref<12x10x4xf32, #tpu.memory_space<vmem>>, vector<10x8x4xf32>
    %70 = vector.shape_cast %69 : vector<10x8x4xf32> to vector<80x4xf32>
    %c0_61 = arith.constant 0 : index
    %c32 = arith.constant 32 : index
    %71 = vector.load %arg12[%c0_61, %c32] : memref<80x36xf32, #tpu.memory_space<vmem>>, vector<80x4xf32>
    tpu.vector_store %arg12[%c0_61, %c32], %70 {strides = array<i32>} : memref<80x36xf32, #tpu.memory_space<vmem>>, vector<80x4xf32>,
    %c0_62 = arith.constant 0 : index
    %c0_63 = arith.constant 0 : index
    %72 = vector.load %arg12[%c0_62, %c0_63] : memref<80x36xf32, #tpu.memory_space<vmem>>, vector<80x36xf32>
    %c0_64 = arith.constant 0 : index
    %c0_65 = arith.constant 0 : index
    %73 = vector.load %arg5[%c0_64, %c0_65] : memref<36x8xf32, #tpu.memory_space<vmem>>, vector<36x8xf32>
    %cst_66 = arith.constant dense<0.000000e+00> : vector<80x8xf32>
    %74 = tpu.matmul %72, %73, %cst_66 {dimension_numbers = #tpu.dot_dimension_numbers<[1], [0], [0], [1], [0, 0, 1, 1], [], []>} : vector<80x36xf32>, vector<36x8xf32>, vector<80x8xf32> -> vector<80x8xf32>
    %c0_67 = arith.constant 0 : index
    %c0_68 = arith.constant 0 : index
    %75 = vector.load %arg6[%c0_67, %c0_68] : memref<2x8xf32, #tpu.memory_space<vmem>>, vector<1x8xf32>
    %76 = vector.broadcast %75 : vector<1x8xf32> to vector<80x8xf32>
    %77 = arith.mulf %74, %76 : vector<80x8xf32>
    %c1_69 = arith.constant 1 : index
    %c0_70 = arith.constant 0 : index
    %78 = vector.load %arg6[%c1_69, %c0_70] : memref<2x8xf32, #tpu.memory_space<vmem>>, vector<1x8xf32>
    %79 = vector.broadcast %78 : vector<1x8xf32> to vector<80x8xf32>
    %80 = arith.addf %77, %79 : vector<80x8xf32>
    %cst_71 = arith.constant 0.000000e+00 : f32
    %81 = vector.broadcast %cst_71 : f32 to vector<80x8xf32>
    %82 = arith.maximumf %80, %81 : vector<80x8xf32>
    %83 = vector.shape_cast %82 : vector<80x8xf32> to vector<10x8x8xf32>
    %cst_72 = arith.constant 0.000000e+00 : f32
    %84 = vector.broadcast %cst_72 : f32 to vector<10x1x8xf32>
    %c0_73 = arith.constant 0 : index
    %c0_74 = arith.constant 0 : index
    %c0_75 = arith.constant 0 : index
    %85 = vector.load %arg13[%c0_73, %c0_74, %c0_75] : memref<10x10x8xf32, #tpu.memory_space<vmem>>, vector<10x1x8xf32>
    tpu.vector_store %arg13[%c0_73, %c0_74, %c0_75], %84 {strides = array<i32>} : memref<10x10x8xf32, #tpu.memory_space<vmem>>, vector<10x1x8xf32>,
    %c0_76 = arith.constant 0 : index
    %c9_77 = arith.constant 9 : index
    %c0_78 = arith.constant 0 : index
    %86 = vector.load %arg13[%c0_76, %c9_77, %c0_78] : memref<10x10x8xf32, #tpu.memory_space<vmem>>, vector<10x1x8xf32>
    tpu.vector_store %arg13[%c0_76, %c9_77, %c0_78], %84 {strides = array<i32>} : memref<10x10x8xf32, #tpu.memory_space<vmem>>, vector<10x1x8xf32>,
    %c0_79 = arith.constant 0 : index
    %c1_80 = arith.constant 1 : index
    %c0_81 = arith.constant 0 : index
    %87 = vector.load %arg13[%c0_79, %c1_80, %c0_81] : memref<10x10x8xf32, #tpu.memory_space<vmem>>, vector<10x8x8xf32>
    tpu.vector_store %arg13[%c0_79, %c1_80, %c0_81], %83 {strides = array<i32>} : memref<10x10x8xf32, #tpu.memory_space<vmem>>, vector<10x8x8xf32>,
    %c0_i32_82 = arith.constant 0 : i32
    %88 = arith.cmpi eq, %arg1, %c0_i32_82 : i32
    %89 = arith.extui %88 : i1 to i32
    %c0_i32_83 = arith.constant 0 : i32
    %90 = arith.cmpi ne, %89, %c0_i32_83 : i32
    scf.if %90 {
      %cst_143 = arith.constant 0.000000e+00 : f32
      %170 = vector.broadcast %cst_143 : f32 to vector<1x10x8xf32>
      %c0_144 = arith.constant 0 : index
      %c0_145 = arith.constant 0 : index
      %c0_146 = arith.constant 0 : index
      %171 = vector.load %arg13[%c0_144, %c0_145, %c0_146] : memref<10x10x8xf32, #tpu.memory_space<vmem>>, vector<1x10x8xf32>
      tpu.vector_store %arg13[%c0_144, %c0_145, %c0_146], %170 {strides = array<i32>} : memref<10x10x8xf32, #tpu.memory_space<vmem>>, vector<1x10x8xf32>,
    } else {
    }
    %c0_i32_84 = arith.constant 0 : i32
    %91 = arith.cmpi eq, %arg1, %c0_i32_84 : i32
    %92 = arith.extui %91 : i1 to i32
    %c0_i32_85 = arith.constant 0 : i32
    %93 = arith.cmpi ne, %92, %c0_i32_85 : i32
    scf.if %93 {
      %cst_143 = arith.constant 0.000000e+00 : f32
      %170 = vector.broadcast %cst_143 : f32 to vector<1x10x8xf32>
      %c9_144 = arith.constant 9 : index
      %c0_145 = arith.constant 0 : index
      %c0_146 = arith.constant 0 : index
      %171 = vector.load %arg13[%c9_144, %c0_145, %c0_146] : memref<10x10x8xf32, #tpu.memory_space<vmem>>, vector<1x10x8xf32>
      tpu.vector_store %arg13[%c9_144, %c0_145, %c0_146], %170 {strides = array<i32>} : memref<10x10x8xf32, #tpu.memory_space<vmem>>, vector<1x10x8xf32>,
    } else {
    }
    %c0_86 = arith.constant 0 : index
    %c0_87 = arith.constant 0 : index
    %c0_88 = arith.constant 0 : index
    %94 = vector.load %arg13[%c0_86, %c0_87, %c0_88] : memref<10x10x8xf32, #tpu.memory_space<vmem>>, vector<8x8x8xf32>
    %c0_89 = arith.constant 0 : index
    %c0_90 = arith.constant 0 : index
    %95 = vector.load %arg7[%c0_89, %c0_90] : memref<11x8xf32, #tpu.memory_space<vmem>>, vector<1x8xf32>
    %96 = vector.shape_cast %95 : vector<1x8xf32> to vector<1x1x8xf32>
    %97 = vector.broadcast %96 : vector<1x1x8xf32> to vector<8x8x8xf32>
    %98 = arith.mulf %94, %97 : vector<8x8x8xf32>
    %c0_91 = arith.constant 0 : index
    %c1_92 = arith.constant 1 : index
    %c0_93 = arith.constant 0 : index
    %99 = vector.load %arg13[%c0_91, %c1_92, %c0_93] : memref<10x10x8xf32, #tpu.memory_space<vmem>>, vector<8x8x8xf32>
    %c1_94 = arith.constant 1 : index
    %c0_95 = arith.constant 0 : index
    %100 = vector.load %arg7[%c1_94, %c0_95] : memref<11x8xf32, #tpu.memory_space<vmem>>, vector<1x8xf32>
    %101 = vector.shape_cast %100 : vector<1x8xf32> to vector<1x1x8xf32>
    %102 = vector.broadcast %101 : vector<1x1x8xf32> to vector<8x8x8xf32>
    %103 = arith.mulf %99, %102 : vector<8x8x8xf32>
    %104 = arith.addf %98, %103 : vector<8x8x8xf32>
    %c0_96 = arith.constant 0 : index
    %c2_97 = arith.constant 2 : index
    %c0_98 = arith.constant 0 : index
    %105 = vector.load %arg13[%c0_96, %c2_97, %c0_98] : memref<10x10x8xf32, #tpu.memory_space<vmem>>, vector<8x8x8xf32>
    %c2_99 = arith.constant 2 : index
    %c0_100 = arith.constant 0 : index
    %106 = vector.load %arg7[%c2_99, %c0_100] : memref<11x8xf32, #tpu.memory_space<vmem>>, vector<1x8xf32>
    %107 = vector.shape_cast %106 : vector<1x8xf32> to vector<1x1x8xf32>
    %108 = vector.broadcast %107 : vector<1x1x8xf32> to vector<8x8x8xf32>
    %109 = arith.mulf %105, %108 : vector<8x8x8xf32>
    %110 = arith.addf %104, %109 : vector<8x8x8xf32>
    %c1_101 = arith.constant 1 : index
    %c0_102 = arith.constant 0 : index
    %c0_103 = arith.constant 0 : index
    %111 = vector.load %arg13[%c1_101, %c0_102, %c0_103] : memref<10x10x8xf32, #tpu.memory_space<vmem>>, vector<8x8x8xf32>
    %c3 = arith.constant 3 : index
    %c0_104 = arith.constant 0 : index
    %112 = vector.load %arg7[%c3, %c0_104] : memref<11x8xf32, #tpu.memory_space<vmem>>, vector<1x8xf32>
    %113 = vector.shape_cast %112 : vector<1x8xf32> to vector<1x1x8xf32>
    %114 = vector.broadcast %113 : vector<1x1x8xf32> to vector<8x8x8xf32>
    %115 = arith.mulf %111, %114 : vector<8x8x8xf32>
    %116 = arith.addf %110, %115 : vector<8x8x8xf32>
    %c1_105 = arith.constant 1 : index
    %c1_106 = arith.constant 1 : index
    %c0_107 = arith.constant 0 : index
    %117 = vector.load %arg13[%c1_105, %c1_106, %c0_107] : memref<10x10x8xf32, #tpu.memory_space<vmem>>, vector<8x8x8xf32>
    %c4_108 = arith.constant 4 : index
    %c0_109 = arith.constant 0 : index
    %118 = vector.load %arg7[%c4_108, %c0_109] : memref<11x8xf32, #tpu.memory_space<vmem>>, vector<1x8xf32>
    %119 = vector.shape_cast %118 : vector<1x8xf32> to vector<1x1x8xf32>
    %120 = vector.broadcast %119 : vector<1x1x8xf32> to vector<8x8x8xf32>
    %121 = arith.mulf %117, %120 : vector<8x8x8xf32>
    %122 = arith.addf %116, %121 : vector<8x8x8xf32>
    %c1_110 = arith.constant 1 : index
    %c2_111 = arith.constant 2 : index
    %c0_112 = arith.constant 0 : index
    %123 = vector.load %arg13[%c1_110, %c2_111, %c0_112] : memref<10x10x8xf32, #tpu.memory_space<vmem>>, vector<8x8x8xf32>
    %c5 = arith.constant 5 : index
    %c0_113 = arith.constant 0 : index
    %124 = vector.load %arg7[%c5, %c0_113] : memref<11x8xf32, #tpu.memory_space<vmem>>, vector<1x8xf32>
    %125 = vector.shape_cast %124 : vector<1x8xf32> to vector<1x1x8xf32>
    %126 = vector.broadcast %125 : vector<1x1x8xf32> to vector<8x8x8xf32>
    %127 = arith.mulf %123, %126 : vector<8x8x8xf32>
    %128 = arith.addf %122, %127 : vector<8x8x8xf32>
    %c2_114 = arith.constant 2 : index
    %c0_115 = arith.constant 0 : index
    %c0_116 = arith.constant 0 : index
    %129 = vector.load %arg13[%c2_114, %c0_115, %c0_116] : memref<10x10x8xf32, #tpu.memory_space<vmem>>, vector<8x8x8xf32>
    %c6 = arith.constant 6 : index
    %c0_117 = arith.constant 0 : index
    %130 = vector.load %arg7[%c6, %c0_117] : memref<11x8xf32, #tpu.memory_space<vmem>>, vector<1x8xf32>
    %131 = vector.shape_cast %130 : vector<1x8xf32> to vector<1x1x8xf32>
    %132 = vector.broadcast %131 : vector<1x1x8xf32> to vector<8x8x8xf32>
    %133 = arith.mulf %129, %132 : vector<8x8x8xf32>
    %134 = arith.addf %128, %133 : vector<8x8x8xf32>
    %c2_118 = arith.constant 2 : index
    %c1_119 = arith.constant 1 : index
    %c0_120 = arith.constant 0 : index
    %135 = vector.load %arg13[%c2_118, %c1_119, %c0_120] : memref<10x10x8xf32, #tpu.memory_space<vmem>>, vector<8x8x8xf32>
    %c7 = arith.constant 7 : index
    %c0_121 = arith.constant 0 : index
    %136 = vector.load %arg7[%c7, %c0_121] : memref<11x8xf32, #tpu.memory_space<vmem>>, vector<1x8xf32>
    %137 = vector.shape_cast %136 : vector<1x8xf32> to vector<1x1x8xf32>
    %138 = vector.broadcast %137 : vector<1x1x8xf32> to vector<8x8x8xf32>
    %139 = arith.mulf %135, %138 : vector<8x8x8xf32>
    %140 = arith.addf %134, %139 : vector<8x8x8xf32>
    %c2_122 = arith.constant 2 : index
    %c2_123 = arith.constant 2 : index
    %c0_124 = arith.constant 0 : index
    %141 = vector.load %arg13[%c2_122, %c2_123, %c0_124] : memref<10x10x8xf32, #tpu.memory_space<vmem>>, vector<8x8x8xf32>
    %c8_125 = arith.constant 8 : index
    %c0_126 = arith.constant 0 : index
    %142 = vector.load %arg7[%c8_125, %c0_126] : memref<11x8xf32, #tpu.memory_space<vmem>>, vector<1x8xf32>
    %143 = vector.shape_cast %142 : vector<1x8xf32> to vector<1x1x8xf32>
    %144 = vector.broadcast %143 : vector<1x1x8xf32> to vector<8x8x8xf32>
    %145 = arith.mulf %141, %144 : vector<8x8x8xf32>
    %146 = arith.addf %140, %145 : vector<8x8x8xf32>
    %c9_127 = arith.constant 9 : index
    %c0_128 = arith.constant 0 : index
    %147 = vector.load %arg7[%c9_127, %c0_128] : memref<11x8xf32, #tpu.memory_space<vmem>>, vector<1x8xf32>
    %148 = vector.shape_cast %147 : vector<1x8xf32> to vector<1x1x8xf32>
    %149 = vector.broadcast %148 : vector<1x1x8xf32> to vector<8x8x8xf32>
    %150 = arith.mulf %146, %149 : vector<8x8x8xf32>
    %c10_129 = arith.constant 10 : index
    %c0_130 = arith.constant 0 : index
    %151 = vector.load %arg7[%c10_129, %c0_130] : memref<11x8xf32, #tpu.memory_space<vmem>>, vector<1x8xf32>
    %152 = vector.shape_cast %151 : vector<1x8xf32> to vector<1x1x8xf32>
    %153 = vector.broadcast %152 : vector<1x1x8xf32> to vector<8x8x8xf32>
    %154 = arith.addf %150, %153 : vector<8x8x8xf32>
    %cst_131 = arith.constant 0.000000e+00 : f32
    %155 = vector.broadcast %cst_131 : f32 to vector<8x8x8xf32>
    %156 = arith.maximumf %154, %155 : vector<8x8x8xf32>
    %157 = vector.shape_cast %156 : vector<8x8x8xf32> to vector<64x8xf32>
    %c0_132 = arith.constant 0 : index
    %c0_133 = arith.constant 0 : index
    %158 = vector.load %arg8[%c0_132, %c0_133] : memref<8x8xf32, #tpu.memory_space<vmem>>, vector<8x8xf32>
    %cst_134 = arith.constant dense<0.000000e+00> : vector<8x64xf32>
    %159 = tpu.matmul %158, %157, %cst_134 {dimension_numbers = #tpu.dot_dimension_numbers<[1], [1], [0], [0], [0, 0, 1, 0], [], []>} : vector<8x8xf32>, vector<64x8xf32>, vector<8x64xf32> -> vector<8x64xf32>
    %c0_135 = arith.constant 0 : index
    %c0_136 = arith.constant 0 : index
    %160 = vector.load %arg9[%c0_135, %c0_136] : memref<8x2xf32, #tpu.memory_space<vmem>>, vector<8x1xf32>
    %161 = vector.broadcast %160 : vector<8x1xf32> to vector<8x64xf32>
    %162 = arith.mulf %159, %161 : vector<8x64xf32>
    %c0_137 = arith.constant 0 : index
    %c1_138 = arith.constant 1 : index
    %163 = vector.load %arg9[%c0_137, %c1_138] : memref<8x2xf32, #tpu.memory_space<vmem>>, vector<8x1xf32>
    %164 = vector.broadcast %163 : vector<8x1xf32> to vector<8x64xf32>
    %165 = arith.addf %162, %164 : vector<8x64xf32>
    %cst_139 = arith.constant 0.000000e+00 : f32
    %166 = vector.broadcast %cst_139 : f32 to vector<8x64xf32>
    %167 = arith.maximumf %165, %166 : vector<8x64xf32>
    %168 = vector.shape_cast %167 : vector<8x64xf32> to vector<1x8x64xf32>
    %c0_140 = arith.constant 0 : index
    %c0_141 = arith.constant 0 : index
    %c0_142 = arith.constant 0 : index
    %169 = vector.load %arg10[%c0_140, %c0_141, %c0_142] : memref<1x8x64xf32, #tpu.memory_space<vmem>>, vector<1x8x64xf32>
    tpu.vector_store %arg10[%c0_140, %c0_141, %c0_142], %168 {strides = array<i32>} : memref<1x8x64xf32, #tpu.memory_space<vmem>>, vector<1x8x64xf32>,
    return
  }
  func.func @transform_0(%arg0: i32, %arg1: i32) -> (i32, i32, i32, i32) {
    %c0_i32 = arith.constant 0 : i32
    %c0_i32_0 = arith.constant 0 : i32
    %c0_i32_1 = arith.constant 0 : i32
    return %arg0, %arg1, %c0_i32, %c0_i32_0 : i32, i32, i32, i32
  }
  func.func @transform_1(%arg0: i32, %arg1: i32) -> (i32, i32, i32, i32) {
    %c4_i32 = arith.constant 4 : i32
    %0 = arith.muli %arg1, %c4_i32 : i32
    %c1_i32 = arith.constant 1 : i32
    %1 = arith.subi %0, %c1_i32 : i32
    %c3_i32 = arith.constant 3 : i32
    %2 = arith.minsi %1, %c3_i32 : i32
    %c0_i32 = arith.constant 0 : i32
    %3 = arith.maxsi %2, %c0_i32 : i32
    %c0_i32_0 = arith.constant 0 : i32
    %c0_i32_1 = arith.constant 0 : i32
    %c0_i32_2 = arith.constant 0 : i32
    return %arg0, %3, %c0_i32_0, %c0_i32_1 : i32, i32, i32, i32
  }
  func.func @transform_2(%arg0: i32, %arg1: i32) -> (i32, i32, i32, i32) {
    %c4_i32 = arith.constant 4 : i32
    %0 = arith.muli %arg1, %c4_i32 : i32
    %c4_i32_0 = arith.constant 4 : i32
    %1 = arith.addi %0, %c4_i32_0 : i32
    %c3_i32 = arith.constant 3 : i32
    %2 = arith.minsi %1, %c3_i32 : i32
    %c0_i32 = arith.constant 0 : i32
    %3 = arith.maxsi %2, %c0_i32 : i32
    %c0_i32_1 = arith.constant 0 : i32
    %c0_i32_2 = arith.constant 0 : i32
    %c0_i32_3 = arith.constant 0 : i32
    return %arg0, %3, %c0_i32_1, %c0_i32_2 : i32, i32, i32, i32
  }
  func.func @transform_3(%arg0: i32, %arg1: i32) -> (i32, i32) {
    %c0_i32 = arith.constant 0 : i32
    %c0_i32_0 = arith.constant 0 : i32
    %c0_i32_1 = arith.constant 0 : i32
    return %c0_i32, %c0_i32_0 : i32, i32
  }
  func.func @transform_4(%arg0: i32, %arg1: i32) -> (i32, i32) {
    %c0_i32 = arith.constant 0 : i32
    %c0_i32_0 = arith.constant 0 : i32
    %c0_i32_1 = arith.constant 0 : i32
    return %c0_i32, %c0_i32_0 : i32, i32
  }
  func.func @transform_5(%arg0: i32, %arg1: i32) -> (i32, i32) {
    %c0_i32 = arith.constant 0 : i32
    %c0_i32_0 = arith.constant 0 : i32
    %c0_i32_1 = arith.constant 0 : i32
    return %c0_i32, %c0_i32_0 : i32, i32
  }
  func.func @transform_6(%arg0: i32, %arg1: i32) -> (i32, i32) {
    %c0_i32 = arith.constant 0 : i32
    %c0_i32_0 = arith.constant 0 : i32
    %c0_i32_1 = arith.constant 0 : i32
    return %c0_i32, %c0_i32_0 : i32, i32
  }
  func.func @transform_7(%arg0: i32, %arg1: i32) -> (i32, i32) {
    %c0_i32 = arith.constant 0 : i32
    %c0_i32_0 = arith.constant 0 : i32
    %c0_i32_1 = arith.constant 0 : i32
    return %c0_i32, %c0_i32_0 : i32, i32
  }
  func.func @transform_8(%arg0: i32, %arg1: i32) -> (i32, i32, i32) {
    %c0_i32 = arith.constant 0 : i32
    %c0_i32_0 = arith.constant 0 : i32
    return %arg0, %c0_i32, %arg1 : i32, i32, i32
  }
}

</mosaic_0001>

<llo_original>
// kernel: tpu_custom_call.1
$region0: #{tpu_custom_call.1}
  #allocation0 [shape = 'u32[]', space=smem, size = 0x4, offset = 0x4, fixed_abs, tag = 'smem constant byte address 0x4 - core index']
  #allocation1 [shape = 'u32[144,128]{1,0:T(1,128)}', space=vmem, size = 0x12000, scoped, tag = 'internal scratch']
  #allocation2 [shape = 'f32[12,10,4]{2,1,0:T(8,128)}', space=vmem, size = 0x18000, scoped, tag = 'scratch operand']
  #allocation3 [shape = 'f32[80,36]{1,0:T(8,128)}', space=vmem, size = 0xa000, scoped, tag = 'scratch operand']
  #allocation4 [shape = 'f32[10,10,8]{2,1,0:T(8,128)}', space=vmem, size = 0x14000, scoped, tag = 'scratch operand']
  %s0 = inlined_call_operand.vmem [shape: f32[2,16,8,8], index: 0, kind: input, shape index: {}]
  %s1 = inlined_call_operand.vmem [shape: f32[2,16,8,8], index: 1, kind: input, shape index: {}]
  %s2 = inlined_call_operand.vmem [shape: f32[2,16,8,8], index: 2, kind: input, shape index: {}]
  %s3 = inlined_call_operand.vmem [shape: f32[36,8], index: 3, kind: input, shape index: {}]
  %s4 = inlined_call_operand.vmem [shape: f32[2,8], index: 4, kind: input, shape index: {}]
  %s5 = inlined_call_operand.vmem [shape: f32[11,8], index: 5, kind: input, shape index: {}]
  %s6 = inlined_call_operand.vmem [shape: f32[8,8], index: 6, kind: input, shape index: {}]
  %s7 = inlined_call_operand.vmem [shape: f32[8,2], index: 7, kind: input, shape index: {}]
  %s8 = inlined_call_operand.hbm [shape: f32[2,8,64], index: 8, kind: output, shape index: {}]
  %s9 = sld [smem:[#allocation0]]
  $region73: #{tpu_custom_call.1} parent=0
    _
  %s11 = ssub.s32 1, %s9
  %s12 = scalar_select 0, %s11, %s9
  $region1: #{tpu_custom_call.1} parent=0
    #allocation5 [shape = 'u8[8192]{0}', space=vmem, size = 0x2000, scoped, tag = 'output window, operand 0']
    #allocation6 [shape = 's32[2]{0}', space=sflag, size = 0x8, scoped, tag = 'scoped memory for tpu_custom_call.1']
    %13 = vsyncpa [#allocation6], 0
    %s14 = scalar_lea.sflag [#allocation6], 1
    %15 = vsyncpa %s14, 0
    loop: start=0, step=1, limit=4
    $region2: #{tpu_custom_call.1} parent=1 // loop_pre_header
      _
    $region3: #{tpu_custom_call.1} parent=1 // loop_header
      %s17 = sphi 0, %s21
      %p18 = scmp.ge.s32.totalorder %s17, 4
      %s24 = sphi 0, %s36
      %s25 = sphi 0, %s32
      %s26 = sphi 0, %s24
      %s27 = sphi 0, %s25
      %s28 = sphi 0, %s26
      %s29 = sphi 0, %s27
      %s41 = sphi 0, %s43
      %s44 = sphi 0, %s41
      %s45 = sphi 0, %s44
      %s61 = sphi 0, %s45
      %s81 = sphi 0, %s83
      %s84 = sphi 0, %s81
      %s85 = sphi 0, %s84
      %s101 = sphi 0, %s85
      %s121 = sphi 0, %s123
      %s124 = sphi 0, %s121
      %s125 = sphi 0, %s124
      %s141 = sphi 0, %s125
      %s145 = sphi 0, %s145
      %s147 = sphi 0, %s145
      %s148 = sphi 0, %s147
      %s162 = sphi 0, %s148
      %s166 = sphi 0, %s166
      %s168 = sphi 0, %s166
      %s169 = sphi 0, %s168
      %s183 = sphi 0, %s169
      %s187 = sphi 0, %s187
      %s189 = sphi 0, %s187
      %s190 = sphi 0, %s189
      %s204 = sphi 0, %s190
      %s208 = sphi 0, %s208
      %s210 = sphi 0, %s208
      %s211 = sphi 0, %s210
      %s225 = sphi 0, %s211
      %s229 = sphi 0, %s229
      %s231 = sphi 0, %s229
      %s232 = sphi 0, %s231
      %s246 = sphi 0, %s232
      %s254 = sphi 0, %s256
      %s257 = sphi 0, %s254
      %s258 = sphi 0, %s257
      %s274 = sphi 0, %s258
    $region4: #{tpu_custom_call.1} parent=1 // loop_header_branch
      %20 = sbr.rel (%p18) target = $region8
    $region5: #{tpu_custom_call.1} parent=1 // loop_body
      %s22 = ssub.s32 %s17, 1
      %s23 = ssub.s32 %s17, 2
      %s30 = sadd.s32 1, %s25
      %p31 = scmp.ge.s32.totalorder %s30, 1
      %s32 = scalar_select %p31, 0, %s30
      %s33 = sadd.s32 1, %s24
      %s34 = scalar_select %p31, %s33, %s24
      %p35 = scmp.ge.s32.totalorder %s34, 2
      %s36 = scalar_select %p35, 0, %s34
      %s37 = ssub.s32 %s24, %s36
      %s38 = ssub.s32 %s25, %s32
      %s39 = sor.u32 %s37, %s38
      %p40 = scmp.eq.s32.totalorder %s39, 0
      %s42 = sadd.s32 %s41, 1
      %s43 = scalar_select %p40, %s41, %s42
      %p46 = pneg %p40
      %p47 = scmp.eq.s32.totalorder %s17, 1
      %p48 = por %p46, %p47
      %p49 = scmp.ne.s32.totalorder %s41, %s44
      %p50 = scmp.eq.s32.totalorder %s17, 0
      %p51 = por %p49, %p50
      %p52 = scmp.ne.s32.totalorder %s41, %s44
      %p53 = scmp.eq.s32.totalorder %s22, 1
      %p54 = por %p52, %p53
      %p55 = scmp.ne.s32.totalorder %s44, %s45
      %p56 = scmp.eq.s32.totalorder %s22, 0
      %p57 = por %p55, %p56
      %p58 = scmp.ne.s32.totalorder %s44, %s45
      %p59 = scmp.eq.s32.totalorder %s23, 1
      %p60 = por %p58, %p59
      %p62 = scmp.ne.s32.totalorder %s45, %s61
      %p63 = scmp.eq.s32.totalorder %s23, 0
      %p64 = por %p62, %p63
      %s65 = smul.u32 %s25, 4
      %s66 = ssub.s32 %s65, 1
      %p67 = scmp.lt.s32.totalorder %s66, 3
      %s68 = scalar_select %p67, %s66, 3
      %p69 = scmp.gt.s32.totalorder %s68, 0
      %s70 = scalar_select %p69, %s68, 0
      %s71 = smul.u32 %s32, 4
      %s72 = ssub.s32 %s71, 1
      %p73 = scmp.lt.s32.totalorder %s72, 3
      %s74 = scalar_select %p73, %s72, 3
      %p75 = scmp.gt.s32.totalorder %s74, 0
      %s76 = scalar_select %p75, %s74, 0
      %s77 = ssub.s32 %s24, %s36
      %s78 = ssub.s32 %s70, %s76
      %s79 = sor.u32 %s77, %s78
      %p80 = scmp.eq.s32.totalorder %s79, 0
      %s82 = sadd.s32 %s81, 1
      %s83 = scalar_select %p80, %s81, %s82
      %p86 = pneg %p80
      %p87 = scmp.eq.s32.totalorder %s17, 1
      %p88 = por %p86, %p87
      %p89 = scmp.ne.s32.totalorder %s81, %s84
      %p90 = scmp.eq.s32.totalorder %s17, 0
      %p91 = por %p89, %p90
      %p92 = scmp.ne.s32.totalorder %s81, %s84
      %p93 = scmp.eq.s32.totalorder %s22, 1
      %p94 = por %p92, %p93
      %p95 = scmp.ne.s32.totalorder %s84, %s85
      %p96 = scmp.eq.s32.totalorder %s22, 0
      %p97 = por %p95, %p96
      %p98 = scmp.ne.s32.totalorder %s84, %s85
      %p99 = scmp.eq.s32.totalorder %s23, 1
      %p100 = por %p98, %p99
      %p102 = scmp.ne.s32.totalorder %s85, %s101
      %p103 = scmp.eq.s32.totalorder %s23, 0
      %p104 = por %p102, %p103
      %s105 = smul.u32 %s25, 4
      %s106 = sadd.s32 %s105, 4
      %p107 = scmp.lt.s32.totalorder %s106, 3
      %s108 = scalar_select %p107, %s106, 3
      %p109 = scmp.gt.s32.totalorder %s108, 0
      %s110 = scalar_select %p109, %s108, 0
      %s111 = smul.u32 %s32, 4
      %s112 = sadd.s32 %s111, 4
      %p113 = scmp.lt.s32.totalorder %s112, 3
      %s114 = scalar_select %p113, %s112, 3
      %p115 = scmp.gt.s32.totalorder %s114, 0
      %s116 = scalar_select %p115, %s114, 0
      %s117 = ssub.s32 %s24, %s36
      %s118 = ssub.s32 %s110, %s116
      %s119 = sor.u32 %s117, %s118
      %p120 = scmp.eq.s32.totalorder %s119, 0
      %s122 = sadd.s32 %s121, 1
      %s123 = scalar_select %p120, %s121, %s122
      %p126 = pneg %p120
      %p127 = scmp.eq.s32.totalorder %s17, 1
      %p128 = por %p126, %p127
      %p129 = scmp.ne.s32.totalorder %s121, %s124
      %p130 = scmp.eq.s32.totalorder %s17, 0
      %p131 = por %p129, %p130
      %p132 = scmp.ne.s32.totalorder %s121, %s124
      %p133 = scmp.eq.s32.totalorder %s22, 1
      %p134 = por %p132, %p133
      %p135 = scmp.ne.s32.totalorder %s124, %s125
      %p136 = scmp.eq.s32.totalorder %s22, 0
      %p137 = por %p135, %p136
      %p138 = scmp.ne.s32.totalorder %s124, %s125
      %p139 = scmp.eq.s32.totalorder %s23, 1
      %p140 = por %p138, %p139
      %p142 = scmp.ne.s32.totalorder %s125, %s141
      %p143 = scmp.eq.s32.totalorder %s23, 0
      %p144 = por %p142, %p143
      %s146 = sadd.s32 %s145, 1
      %p149 = scmp.eq.s32.totalorder %s17, 1
      %p150 = scmp.ne.s32.totalorder %s145, %s147
      %p151 = scmp.eq.s32.totalorder %s17, 0
      %p152 = por %p150, %p151
      %p153 = scmp.ne.s32.totalorder %s145, %s147
      %p154 = scmp.eq.s32.totalorder %s22, 1
      %p155 = por %p153, %p154
      %p156 = scmp.ne.s32.totalorder %s147, %s148
      %p157 = scmp.eq.s32.totalorder %s22, 0
      %p158 = por %p156, %p157
      %p159 = scmp.ne.s32.totalorder %s147, %s148
      %p160 = scmp.eq.s32.totalorder %s23, 1
      %p161 = por %p159, %p160
      %p163 = scmp.ne.s32.totalorder %s148, %s162
      %p164 = scmp.eq.s32.totalorder %s23, 0
      %p165 = por %p163, %p164
      %s167 = sadd.s32 %s166, 1
      %p170 = scmp.eq.s32.totalorder %s17, 1
      %p171 = scmp.ne.s32.totalorder %s166, %s168
      %p172 = scmp.eq.s32.totalorder %s17, 0
      %p173 = por %p171, %p172
      %p174 = scmp.ne.s32.totalorder %s166, %s168
      %p175 = scmp.eq.s32.totalorder %s22, 1
      %p176 = por %p174, %p175
      %p177 = scmp.ne.s32.totalorder %s168, %s169
      %p178 = scmp.eq.s32.totalorder %s22, 0
      %p179 = por %p177, %p178
      %p180 = scmp.ne.s32.totalorder %s168, %s169
      %p181 = scmp.eq.s32.totalorder %s23, 1
      %p182 = por %p180, %p181
      %p184 = scmp.ne.s32.totalorder %s169, %s183
      %p185 = scmp.eq.s32.totalorder %s23, 0
      %p186 = por %p184, %p185
      %s188 = sadd.s32 %s187, 1
      %p191 = scmp.eq.s32.totalorder %s17, 1
      %p192 = scmp.ne.s32.totalorder %s187, %s189
      %p193 = scmp.eq.s32.totalorder %s17, 0
      %p194 = por %p192, %p193
      %p195 = scmp.ne.s32.totalorder %s187, %s189
      %p196 = scmp.eq.s32.totalorder %s22, 1
      %p197 = por %p195, %p196
      %p198 = scmp.ne.s32.totalorder %s189, %s190
      %p199 = scmp.eq.s32.totalorder %s22, 0
      %p200 = por %p198, %p199
      %p201 = scmp.ne.s32.totalorder %s189, %s190
      %p202 = scmp.eq.s32.totalorder %s23, 1
      %p203 = por %p201, %p202
      %p205 = scmp.ne.s32.totalorder %s190, %s204
      %p206 = scmp.eq.s32.totalorder %s23, 0
      %p207 = por %p205, %p206
      %s209 = sadd.s32 %s208, 1
      %p212 = scmp.eq.s32.totalorder %s17, 1
      %p213 = scmp.ne.s32.totalorder %s208, %s210
      %p214 = scmp.eq.s32.totalorder %s17, 0
      %p215 = por %p213, %p214
      %p216 = scmp.ne.s32.totalorder %s208, %s210
      %p217 = scmp.eq.s32.totalorder %s22, 1
      %p218 = por %p216, %p217
      %p219 = scmp.ne.s32.totalorder %s210, %s211
      %p220 = scmp.eq.s32.totalorder %s22, 0
      %p221 = por %p219, %p220
      %p222 = scmp.ne.s32.totalorder %s210, %s211
      %p223 = scmp.eq.s32.totalorder %s23, 1
      %p224 = por %p222, %p223
      %p226 = scmp.ne.s32.totalorder %s211, %s225
      %p227 = scmp.eq.s32.totalorder %s23, 0
      %p228 = por %p226, %p227
      %s230 = sadd.s32 %s229, 1
      %p233 = scmp.eq.s32.totalorder %s17, 1
      %p234 = scmp.ne.s32.totalorder %s229, %s231
      %p235 = scmp.eq.s32.totalorder %s17, 0
      %p236 = por %p234, %p235
      %p237 = scmp.ne.s32.totalorder %s229, %s231
      %p238 = scmp.eq.s32.totalorder %s22, 1
      %p239 = por %p237, %p238
      %p240 = scmp.ne.s32.totalorder %s231, %s232
      %p241 = scmp.eq.s32.totalorder %s22, 0
      %p242 = por %p240, %p241
      %p243 = scmp.ne.s32.totalorder %s231, %s232
      %p244 = scmp.eq.s32.totalorder %s23, 1
      %p245 = por %p243, %p244
      %p247 = scmp.ne.s32.totalorder %s232, %s246
      %p248 = scmp.eq.s32.totalorder %s23, 0
      %p249 = por %p247, %p248
      %s250 = ssub.s32 %s24, %s36
      %s251 = ssub.s32 %s25, %s32
      %s252 = sor.u32 %s250, %s251
      %p253 = scmp.eq.s32.totalorder %s252, 0
      %s255 = sadd.s32 %s254, 1
      %s256 = scalar_select %p253, %s254, %s255
      %p259 = pneg %p253
      %p260 = scmp.eq.s32.totalorder %s17, 1
      %p261 = por %p259, %p260
      %p262 = scmp.ne.s32.totalorder %s254, %s257
      %p263 = scmp.eq.s32.totalorder %s17, 0
      %p264 = por %p262, %p263
      %p265 = scmp.ne.s32.totalorder %s254, %s257
      %p266 = scmp.eq.s32.totalorder %s22, 1
      %p267 = por %p265, %p266
      %p268 = scmp.ne.s32.totalorder %s257, %s258
      %p269 = scmp.eq.s32.totalorder %s22, 0
      %p270 = por %p268, %p269
      %p271 = scmp.ne.s32.totalorder %s257, %s258
      %p272 = scmp.eq.s32.totalorder %s23, 1
      %p273 = por %p271, %p272
      %p275 = scmp.ne.s32.totalorder %s258, %s274
      %p276 = scmp.eq.s32.totalorder %s23, 0
      %p277 = por %p275, %p276
      %p278 = scmp.le.s32.totalorder 1, %s17
      %p279 = scmp.lt.s32.totalorder %s17, 3
      %p280 = pnand %p278, %p279
      %p281 = pneg %p280
      // Predicated region
      $region9: #{tpu_custom_call.1} parent=5 // pred_check
        _
      $region10: #{tpu_custom_call.1} parent=5 // pred_check_branch
        %283 = sbr.rel (%p280) target = $region12
      $region11: #{tpu_custom_call.1} parent=5 // pred_region
        %s284 = ssub.s32 %s17, 1
        // Predicated region
        $region13: #{tpu_custom_call.1} parent=11 // pred_check
          %p285 = pneg %p158
        $region14: #{tpu_custom_call.1} parent=11 // pred_check_branch
          %287 = sbr.rel (%p285) target = $region16
        $region15: #{tpu_custom_call.1} parent=11 // pred_region
          _
        $region16: #{tpu_custom_call.1} parent=11 // pred_fallthru
          _
        // Predicated region
        $region17: #{tpu_custom_call.1} parent=11 // pred_check
          %p288 = pneg %p179
        $region18: #{tpu_custom_call.1} parent=11 // pred_check_branch
          %290 = sbr.rel (%p288) target = $region20
        $region19: #{tpu_custom_call.1} parent=11 // pred_region
          _
        $region20: #{tpu_custom_call.1} parent=11 // pred_fallthru
          _
        // Predicated region
        $region21: #{tpu_custom_call.1} parent=11 // pred_check
          %p291 = pneg %p200
        $region22: #{tpu_custom_call.1} parent=11 // pred_check_branch
          %293 = sbr.rel (%p291) target = $region24
        $region23: #{tpu_custom_call.1} parent=11 // pred_region
          _
        $region24: #{tpu_custom_call.1} parent=11 // pred_fallthru
          _
        // Predicated region
        $region25: #{tpu_custom_call.1} parent=11 // pred_check
          %p294 = pneg %p221
        $region26: #{tpu_custom_call.1} parent=11 // pred_check_branch
          %296 = sbr.rel (%p294) target = $region28
        $region27: #{tpu_custom_call.1} parent=11 // pred_region
          _
        $region28: #{tpu_custom_call.1} parent=11 // pred_fallthru
          _
        // Predicated region
        $region29: #{tpu_custom_call.1} parent=11 // pred_check
          %p297 = pneg %p242
        $region30: #{tpu_custom_call.1} parent=11 // pred_check_branch
          %299 = sbr.rel (%p297) target = $region32
        $region31: #{tpu_custom_call.1} parent=11 // pred_region
          _
        $region32: #{tpu_custom_call.1} parent=11 // pred_fallthru
          _
      $region12: #{tpu_custom_call.1} parent=5 // pred_fallthru
        _
      %p300 = scmp.lt.s32.totalorder %s17, 2
      // Predicated region
      $region33: #{tpu_custom_call.1} parent=5 // pred_check
        %p301 = pneg %p300
      $region34: #{tpu_custom_call.1} parent=5 // pred_check_branch
        %303 = sbr.rel (%p301) target = $region36
      $region35: #{tpu_custom_call.1} parent=5 // pred_region
        // Predicated region
        $region37: #{tpu_custom_call.1} parent=35 // pred_check
          %p304 = pneg %p51
        $region38: #{tpu_custom_call.1} parent=35 // pred_check_branch
          %306 = sbr.rel (%p304) target = $region40
        $region39: #{tpu_custom_call.1} parent=35 // pred_region
          %s307 = smul.u32 16, %s25
          %p308 = scmp.lt.s32.totalorder %s24, 1
          %s309 = scalar_select %p308, %s24, 1
          %p310 = scmp.lt.s32.totalorder %s307, 15
          %s311 = scalar_select %p310, %s307, 15
          %s312 = smul.addr %s309, 16
          %s313 = sadd.s32 %s311, %s312
          %s314 = smul.addr %s313, 8
          %s315 = scalar_lea.vmem %s0, %s314
          %s316 = smul.u32 16, %s25
        $region40: #{tpu_custom_call.1} parent=35 // pred_fallthru
          _
        // Predicated region
        $region41: #{tpu_custom_call.1} parent=35 // pred_check
          %p317 = pneg %p91
        $region42: #{tpu_custom_call.1} parent=35 // pred_check_branch
          %319 = sbr.rel (%p317) target = $region44
        $region43: #{tpu_custom_call.1} parent=35 // pred_region
          %s320 = smul.u32 %s25, 4
          %s321 = ssub.s32 %s320, 1
          %p322 = scmp.lt.s32.totalorder %s321, 3
          %s323 = scalar_select %p322, %s321, 3
          %p324 = scmp.gt.s32.totalorder %s323, 0
          %s325 = scalar_select %p324, %s323, 0
          %s326 = smul.u32 4, %s325
          %p327 = scmp.lt.s32.totalorder %s24, 1
          %s328 = scalar_select %p327, %s24, 1
          %p329 = scmp.lt.s32.totalorder %s326, 15
          %s330 = scalar_select %p329, %s326, 15
          %s331 = smul.addr %s328, 16
          %s332 = sadd.s32 %s330, %s331
          %s333 = smul.addr %s332, 8
          %s334 = scalar_lea.vmem %s1, %s333
          %s335 = smul.u32 %s25, 4
          %s336 = ssub.s32 %s335, 1
          %p337 = scmp.lt.s32.totalorder %s336, 3
          %s338 = scalar_select %p337, %s336, 3
          %p339 = scmp.gt.s32.totalorder %s338, 0
          %s340 = scalar_select %p339, %s338, 0
          %s341 = smul.u32 4, %s340
        $region44: #{tpu_custom_call.1} parent=35 // pred_fallthru
          _
        // Predicated region
        $region45: #{tpu_custom_call.1} parent=35 // pred_check
          %p342 = pneg %p131
        $region46: #{tpu_custom_call.1} parent=35 // pred_check_branch
          %344 = sbr.rel (%p342) target = $region48
        $region47: #{tpu_custom_call.1} parent=35 // pred_region
          %s345 = smul.u32 %s25, 4
          %s346 = sadd.s32 %s345, 4
          %p347 = scmp.lt.s32.totalorder %s346, 3
          %s348 = scalar_select %p347, %s346, 3
          %p349 = scmp.gt.s32.totalorder %s348, 0
          %s350 = scalar_select %p349, %s348, 0
          %s351 = smul.u32 4, %s350
          %p352 = scmp.lt.s32.totalorder %s24, 1
          %s353 = scalar_select %p352, %s24, 1
          %p354 = scmp.lt.s32.totalorder %s351, 15
          %s355 = scalar_select %p354, %s351, 15
          %s356 = smul.addr %s353, 16
          %s357 = sadd.s32 %s355, %s356
          %s358 = smul.addr %s357, 8
          %s359 = scalar_lea.vmem %s2, %s358
          %s360 = smul.u32 %s25, 4
          %s361 = sadd.s32 %s360, 4
          %p362 = scmp.lt.s32.totalorder %s361, 3
          %s363 = scalar_select %p362, %s361, 3
          %p364 = scmp.gt.s32.totalorder %s363, 0
          %s365 = scalar_select %p364, %s363, 0
          %s366 = smul.u32 4, %s365
        $region48: #{tpu_custom_call.1} parent=35 // pred_fallthru
          _
      $region36: #{tpu_custom_call.1} parent=5 // pred_fallthru
        _
      %p367 = scmp.le.s32.totalorder 1, %s17
      %p368 = scmp.lt.s32.totalorder %s17, 3
      %p369 = pnand %p367, %p368
      %p370 = pneg %p369
      // Predicated region
      $region49: #{tpu_custom_call.1} parent=5 // pred_check
        _
      $region50: #{tpu_custom_call.1} parent=5 // pred_check_branch
        %372 = sbr.rel (%p369) target = $region52
      $region51: #{tpu_custom_call.1} parent=5 // pred_region
        %s373 = ssub.s32 %s17, 1
        %s374 = smul.u32 16, %s27
        %p375 = scmp.lt.s32.totalorder %s26, 1
        %s376 = scalar_select %p375, %s26, 1
        %p377 = scmp.lt.s32.totalorder %s374, 15
        %s378 = scalar_select %p377, %s374, 15
        %s379 = smul.addr %s376, 16
        %s380 = sadd.s32 %s378, %s379
        %s381 = smul.addr %s380, 8
        %s382 = scalar_lea.vmem %s0, %s381
        %p383 = pneg %p57
        %p384 = pneg %p54
        %s385 = smul.u32 %s27, 4
        %s386 = ssub.s32 %s385, 1
        %p387 = scmp.lt.s32.totalorder %s386, 3
        %s388 = scalar_select %p387, %s386, 3
        %p389 = scmp.gt.s32.totalorder %s388, 0
        %s390 = scalar_select %p389, %s388, 0
        %s391 = smul.u32 4, %s390
        %p392 = scmp.lt.s32.totalorder %s26, 1
        %s393 = scalar_select %p392, %s26, 1
        %p394 = scmp.lt.s32.totalorder %s391, 15
        %s395 = scalar_select %p394, %s391, 15
        %s396 = smul.addr %s393, 16
        %s397 = sadd.s32 %s395, %s396
        %s398 = smul.addr %s397, 8
        %s399 = scalar_lea.vmem %s1, %s398
        %p400 = pneg %p97
        %p401 = pneg %p94
        %s402 = smul.u32 %s27, 4
        %s403 = sadd.s32 %s402, 4
        %p404 = scmp.lt.s32.totalorder %s403, 3
        %s405 = scalar_select %p404, %s403, 3
        %p406 = scmp.gt.s32.totalorder %s405, 0
        %s407 = scalar_select %p406, %s405, 0
        %s408 = smul.u32 4, %s407
        %p409 = scmp.lt.s32.totalorder %s26, 1
        %s410 = scalar_select %p409, %s26, 1
        %p411 = scmp.lt.s32.totalorder %s408, 15
        %s412 = scalar_select %p411, %s408, 15
        %s413 = smul.addr %s410, 16
        %s414 = sadd.s32 %s412, %s413
        %s415 = smul.addr %s414, 8
        %s416 = scalar_lea.vmem %s2, %s415
        %p417 = pneg %p137
        %p418 = pneg %p134
        %p419 = pneg %p158
        %p420 = pneg %p155
        %p421 = pneg %p179
        %p422 = pneg %p176
        %p423 = pneg %p200
        %p424 = pneg %p197
        %p425 = pneg %p221
        %p426 = pneg %p218
        %p427 = pneg %p242
        %p428 = pneg %p239
        %p429 = pneg %p270
        %p430 = pneg %p267
        %s431 = sand.u32 %s257, 1
        %s432 = scalar_lea.sflag [#allocation6], %s431
        %s433 = sand.u32 %s257, 1
        %s434 = smul.addr %s433, 8
        %s435 = scalar_lea.vmem [#allocation5], %s434
        %s436 = smul.u32 16, %s27
        %p437 = scmp.lt.s32.totalorder %s26, 1
        %s438 = scalar_select %p437, %s26, 1
        %p439 = scmp.lt.s32.totalorder %s436, 15
        %s440 = scalar_select %p439, %s436, 15
        %s441 = smul.addr %s438, 16
        %s442 = sadd.s32 %s440, %s441
        %s443 = smul.addr %s442, 8
        %s444 = scalar_lea.vmem %s0, %s443
        %s445 = smul.u32 16, %s27
        %s446 = smul.u32 %s27, 4
        %s447 = ssub.s32 %s446, 1
        %p448 = scmp.lt.s32.totalorder %s447, 3
        %s449 = scalar_select %p448, %s447, 3
        %p450 = scmp.gt.s32.totalorder %s449, 0
        %s451 = scalar_select %p450, %s449, 0
        %s452 = smul.u32 4, %s451
        %p453 = scmp.lt.s32.totalorder %s26, 1
        %s454 = scalar_select %p453, %s26, 1
        %p455 = scmp.lt.s32.totalorder %s452, 15
        %s456 = scalar_select %p455, %s452, 15
        %s457 = smul.addr %s454, 16
        %s458 = sadd.s32 %s456, %s457
        %s459 = smul.addr %s458, 8
        %s460 = scalar_lea.vmem %s1, %s459
        %s461 = smul.u32 %s27, 4
        %s462 = ssub.s32 %s461, 1
        %p463 = scmp.lt.s32.totalorder %s462, 3
        %s464 = scalar_select %p463, %s462, 3
        %p465 = scmp.gt.s32.totalorder %s464, 0
        %s466 = scalar_select %p465, %s464, 0
        %s467 = smul.u32 4, %s466
        %s468 = smul.u32 %s27, 4
        %s469 = sadd.s32 %s468, 4
        %p470 = scmp.lt.s32.totalorder %s469, 3
        %s471 = scalar_select %p470, %s469, 3
        %p472 = scmp.gt.s32.totalorder %s471, 0
        %s473 = scalar_select %p472, %s471, 0
        %s474 = smul.u32 4, %s473
        %p475 = scmp.lt.s32.totalorder %s26, 1
        %s476 = scalar_select %p475, %s26, 1
        %p477 = scmp.lt.s32.totalorder %s474, 15
        %s478 = scalar_select %p477, %s474, 15
        %s479 = smul.addr %s476, 16
        %s480 = sadd.s32 %s478, %s479
        %s481 = smul.addr %s480, 8
        %s482 = scalar_lea.vmem %s2, %s481
        %s483 = smul.u32 %s27, 4
        %s484 = sadd.s32 %s483, 4
        %p485 = scmp.lt.s32.totalorder %s484, 3
        %s486 = scalar_select %p485, %s484, 3
        %p487 = scmp.gt.s32.totalorder %s486, 0
        %s488 = scalar_select %p487, %s486, 0
        %s489 = smul.u32 4, %s488
        %vm490 = vcmask 24576
        %491 = vst.msk [vmem:[#allocation2] sm:$0x1] %vm490, 0.0
        %492 = vst.msk [vmem:[#allocation2 + $0x10] sm:$0x1] %vm490, 0.0
        %493 = vst.msk [vmem:[#allocation2 + $0x20] sm:$0x1] %vm490, 0.0
        %494 = vst.msk [vmem:[#allocation2 + $0x30] sm:$0x1] %vm490, 0.0
        %495 = vst.msk [vmem:[#allocation2 + $0x40] sm:$0x1] %vm490, 0.0
        %496 = vst.msk [vmem:[#allocation2 + $0x50] sm:$0x1] %vm490, 0.0
        %497 = vst.msk [vmem:[#allocation2 + $0x60] sm:$0x1] %vm490, 0.0
        %498 = vst.msk [vmem:[#allocation2 + $0x70] sm:$0x1] %vm490, 0.0
        %499 = vst.msk [vmem:[#allocation2 + $0x80] sm:$0x1] %vm490, 0.0
        %500 = vst.msk [vmem:[#allocation2 + $0x90] sm:$0x1] %vm490, 0.0
        %501 = vst.msk [vmem:[#allocation2 + $0xa0] sm:$0x1] %vm490, 0.0
        %502 = vst.msk [vmem:[#allocation2 + $0xb0] sm:$0x1] %vm490, 0.0
        %503 = vst.msk [vmem:[#allocation2 + $0x9] sm:$0x1] %vm490, 0.0
        %504 = vst.msk [vmem:[#allocation2 + $0x19] sm:$0x1] %vm490, 0.0
        %505 = vst.msk [vmem:[#allocation2 + $0x29] sm:$0x1] %vm490, 0.0
        %506 = vst.msk [vmem:[#allocation2 + $0x39] sm:$0x1] %vm490, 0.0
        %507 = vst.msk [vmem:[#allocation2 + $0x49] sm:$0x1] %vm490, 0.0
        %508 = vst.msk [vmem:[#allocation2 + $0x59] sm:$0x1] %vm490, 0.0
        %509 = vst.msk [vmem:[#allocation2 + $0x69] sm:$0x1] %vm490, 0.0
        %510 = vst.msk [vmem:[#allocation2 + $0x79] sm:$0x1] %vm490, 0.0
        %511 = vst.msk [vmem:[#allocation2 + $0x89] sm:$0x1] %vm490, 0.0
        %512 = vst.msk [vmem:[#allocation2 + $0x99] sm:$0x1] %vm490, 0.0
        %513 = vst.msk [vmem:[#allocation2 + $0xa9] sm:$0x1] %vm490, 0.0
        %514 = vst.msk [vmem:[#allocation2 + $0xb9] sm:$0x1] %vm490, 0.0
        %v515 = vld [vmem:[%s444] sm:$0xff]
        %v516 = vld [vmem:[%s444 + $0x8] sm:$0xff]
        %v517 = vld [vmem:[%s444 + $0x10] sm:$0xff]
        %v518 = vld [vmem:[%s444 + $0x18] sm:$0xff]
        %v519 = vld [vmem:[%s444 + $0x20] sm:$0xff]
        %v520 = vld [vmem:[%s444 + $0x28] sm:$0xff]
        %v521 = vld [vmem:[%s444 + $0x30] sm:$0xff]
        %v522 = vld [vmem:[%s444 + $0x38] sm:$0xff]
        %v523 = vld [vmem:[%s444 + $0x40] sm:$0xff]
        %v524 = vld [vmem:[%s444 + $0x48] sm:$0xff]
        %v525 = vld [vmem:[%s444 + $0x50] sm:$0xff]
        %v526 = vld [vmem:[%s444 + $0x58] sm:$0xff]
        %v527 = vld [vmem:[%s444 + $0x60] sm:$0xff]
        %v528 = vld [vmem:[%s444 + $0x68] sm:$0xff]
        %v529 = vld [vmem:[%s444 + $0x70] sm:$0xff]
        %v530 = vld [vmem:[%s444 + $0x78] sm:$0xff]
        %547 = vrot.lane.b32.xlu0 %v515, 124
        %v548 = vpop.permute.xlu0 %547
        %549 = vrot.lane.b32.xlu0 %v516, 124
        %v550 = vpop.permute.xlu0 %549
        %551 = vrot.lane.b32.xlu0 %v517, 124
        %v552 = vpop.permute.xlu0 %551
        %553 = vrot.lane.b32.xlu0 %v518, 124
        %v554 = vpop.permute.xlu0 %553
        %555 = vrot.lane.b32.xlu0 %v519, 124
        %v556 = vpop.permute.xlu0 %555
        %557 = vrot.lane.b32.xlu0 %v520, 124
        %v558 = vpop.permute.xlu0 %557
        %559 = vrot.lane.b32.xlu0 %v521, 124
        %v560 = vpop.permute.xlu0 %559
        %561 = vrot.lane.b32.xlu0 %v522, 124
        %v562 = vpop.permute.xlu0 %561
        %563 = vrot.lane.b32.xlu0 %v523, 124
        %v564 = vpop.permute.xlu0 %563
        %565 = vrot.lane.b32.xlu0 %v524, 124
        %v566 = vpop.permute.xlu0 %565
        %567 = vrot.lane.b32.xlu0 %v525, 124
        %v568 = vpop.permute.xlu0 %567
        %569 = vrot.lane.b32.xlu0 %v526, 124
        %v570 = vpop.permute.xlu0 %569
        %571 = vrot.lane.b32.xlu0 %v527, 124
        %v572 = vpop.permute.xlu0 %571
        %573 = vrot.lane.b32.xlu0 %v528, 124
        %v574 = vpop.permute.xlu0 %573
        %575 = vrot.lane.b32.xlu0 %v529, 124
        %v576 = vpop.permute.xlu0 %575
        %577 = vrot.lane.b32.xlu0 %v530, 124
        %v578 = vpop.permute.xlu0 %577
        %v595 = vmax.f32 %v515, %v548
        %v596 = vmax.f32 %v516, %v550
        %v597 = vmax.f32 %v517, %v552
        %v598 = vmax.f32 %v518, %v554
        %v599 = vmax.f32 %v519, %v556
        %v600 = vmax.f32 %v520, %v558
        %v601 = vmax.f32 %v521, %v560
        %v602 = vmax.f32 %v522, %v562
        %v603 = vmax.f32 %v523, %v564
        %v604 = vmax.f32 %v524, %v566
        %v605 = vmax.f32 %v525, %v568
        %v606 = vmax.f32 %v526, %v570
        %v607 = vmax.f32 %v527, %v572
        %v608 = vmax.f32 %v528, %v574
        %v609 = vmax.f32 %v529, %v576
        %v610 = vmax.f32 %v530, %v578
        %v611 = vmax.f32 %v595, %v596
        %v612 = vmax.f32 %v597, %v598
        %v613 = vmax.f32 %v599, %v600
        %v614 = vmax.f32 %v601, %v602
        %v615 = vmax.f32 %v603, %v604
        %v616 = vmax.f32 %v605, %v606
        %v617 = vmax.f32 %v607, %v608
        %v618 = vmax.f32 %v609, %v610
        %s619 = scalar_lea.vmem [#allocation2], 32
        %vm620 = vcmask 31744
        %621 = vst.msk [vmem:[%s619 + $0x1] sm:$0xff] %vm620, %v611
        %622 = vst.msk [vmem:[%s619 + $0x11] sm:$0xff] %vm620, %v612
        %623 = vst.msk [vmem:[%s619 + $0x21] sm:$0xff] %vm620, %v613
        %624 = vst.msk [vmem:[%s619 + $0x31] sm:$0xff] %vm620, %v614
        %625 = vst.msk [vmem:[%s619 + $0x41] sm:$0xff] %vm620, %v615
        %626 = vst.msk [vmem:[%s619 + $0x51] sm:$0xff] %vm620, %v616
        %627 = vst.msk [vmem:[%s619 + $0x61] sm:$0xff] %vm620, %v617
        %628 = vst.msk [vmem:[%s619 + $0x71] sm:$0xff] %vm620, %v618
        %v629 = vld [vmem:[%s460] sm:$0xff]
        %v630 = vld [vmem:[%s460 + $0x8] sm:$0xff]
        %v631 = vld [vmem:[%s460 + $0x10] sm:$0xff]
        %v632 = vld [vmem:[%s460 + $0x18] sm:$0xff]
        %637 = vrot.lane.b32.xlu0 %v629, 124
        %v638 = vpop.permute.xlu0 %637
        %639 = vrot.lane.b32.xlu0 %v630, 124
        %v640 = vpop.permute.xlu0 %639
        %641 = vrot.lane.b32.xlu0 %v631, 124
        %v642 = vpop.permute.xlu0 %641
        %643 = vrot.lane.b32.xlu0 %v632, 124
        %v644 = vpop.permute.xlu0 %643
        %v649 = vmax.f32 %v629, %v638
        %v650 = vmax.f32 %v630, %v640
        %v651 = vmax.f32 %v631, %v642
        %v652 = vmax.f32 %v632, %v644
        %v653 = vmax.f32 %v649, %v650
        %v654 = vmax.f32 %v651, %v652
        %655 = vst.msk [vmem:[#allocation2 + $0x1] sm:$0xff] %vm620, %v653
        %656 = vst.msk [vmem:[#allocation2 + $0x11] sm:$0xff] %vm620, %v654
        %v657 = vld [vmem:[%s482] sm:$0xff]
        %v658 = vld [vmem:[%s482 + $0x8] sm:$0xff]
        %v659 = vld [vmem:[%s482 + $0x10] sm:$0xff]
        %v660 = vld [vmem:[%s482 + $0x18] sm:$0xff]
        %665 = vrot.lane.b32.xlu0 %v657, 124
        %v666 = vpop.permute.xlu0 %665
        %667 = vrot.lane.b32.xlu0 %v658, 124
        %v668 = vpop.permute.xlu0 %667
        %669 = vrot.lane.b32.xlu0 %v659, 124
        %v670 = vpop.permute.xlu0 %669
        %671 = vrot.lane.b32.xlu0 %v660, 124
        %v672 = vpop.permute.xlu0 %671
        %v677 = vmax.f32 %v657, %v666
        %v678 = vmax.f32 %v658, %v668
        %v679 = vmax.f32 %v659, %v670
        %v680 = vmax.f32 %v660, %v672
        %v681 = vmax.f32 %v677, %v678
        %v682 = vmax.f32 %v679, %v680
        %s683 = scalar_lea.vmem [#allocation2], 160
        %684 = vst.msk [vmem:[%s683 + $0x1] sm:$0xff] %vm620, %v681
        %685 = vst.msk [vmem:[%s683 + $0x11] sm:$0xff] %vm620, %v682
        %p686 = scmp.eq.s32.totalorder %s27, 0
        // Predicated region
        $region53: #{tpu_custom_call.1} parent=51 // pred_check
          %p687 = pneg %p686
        $region54: #{tpu_custom_call.1} parent=51 // pred_check_branch
          %689 = sbr.rel (%p687) target = $region56
        $region55: #{tpu_custom_call.1} parent=51 // pred_region
          %690 = vst.msk [vmem:[#allocation2] sm:$0xff] %vm620, 0.0
          %vm691 = vcmask 25600
          %692 = vst.msk [vmem:[#allocation2 + $0x8] sm:$0x3] %vm691, 0.0
          %693 = vst.msk [vmem:[#allocation2 + $0x10] sm:$0xff] %vm620, 0.0
          %694 = vst.msk [vmem:[#allocation2 + $0x18] sm:$0x3] %vm691, 0.0
          %695 = vst.msk [vmem:[%s683] sm:$0xff] %vm620, 0.0
          %696 = vst.msk [vmem:[%s683 + $0x8] sm:$0x3] %vm691, 0.0
          %697 = vst.msk [vmem:[%s683 + $0x10] sm:$0xff] %vm620, 0.0
          %698 = vst.msk [vmem:[%s683 + $0x18] sm:$0x3] %vm691, 0.0
        $region56: #{tpu_custom_call.1} parent=51 // pred_fallthru
          _
        %v699 = vld [vmem:[#allocation2] sm:$0xff]
        %v700 = vld [vmem:[#allocation2 + $0x10] sm:$0xff]
        %v701 = vld [vmem:[#allocation2 + $0x20] sm:$0xff]
        %v702 = vld [vmem:[#allocation2 + $0x30] sm:$0xff]
        %v703 = vld [vmem:[#allocation2 + $0x40] sm:$0xff]
        %v704 = vld [vmem:[#allocation2 + $0x50] sm:$0xff]
        %v705 = vld [vmem:[#allocation2 + $0x60] sm:$0xff]
        %v706 = vld [vmem:[#allocation2 + $0x70] sm:$0xff]
        %v707 = vld [vmem:[#allocation2 + $0x80] sm:$0xff]
        %v708 = vld [vmem:[#allocation2 + $0x90] sm:$0xff]
        %709 = vst.msk [vmem:[#allocation3] sm:$0xff] %vm620, %v699
        %710 = vst.msk [vmem:[#allocation3 + $0x8] sm:$0xff] %vm620, %v700
        %711 = vst.msk [vmem:[#allocation3 + $0x10] sm:$0xff] %vm620, %v701
        %712 = vst.msk [vmem:[#allocation3 + $0x18] sm:$0xff] %vm620, %v702
        %713 = vst.msk [vmem:[#allocation3 + $0x20] sm:$0xff] %vm620, %v703
        %714 = vst.msk [vmem:[#allocation3 + $0x28] sm:$0xff] %vm620, %v704
        %715 = vst.msk [vmem:[#allocation3 + $0x30] sm:$0xff] %vm620, %v705
        %716 = vst.msk [vmem:[#allocation3 + $0x38] sm:$0xff] %vm620, %v706
        %717 = vst.msk [vmem:[#allocation3 + $0x40] sm:$0xff] %vm620, %v707
        %718 = vst.msk [vmem:[#allocation3 + $0x48] sm:$0xff] %vm620, %v708
        %v719 = vld [vmem:[#allocation2 + $0x1] sm:$0xff]
        %v720 = vld [vmem:[#allocation2 + $0x11] sm:$0xff]
        %v721 = vld [vmem:[#allocation2 + $0x21] sm:$0xff]
        %v722 = vld [vmem:[#allocation2 + $0x31] sm:$0xff]
        %v723 = vld [vmem:[#allocation2 + $0x41] sm:$0xff]
        %v724 = vld [vmem:[#allocation2 + $0x51] sm:$0xff]
        %v725 = vld [vmem:[#allocation2 + $0x61] sm:$0xff]
        %v726 = vld [vmem:[#allocation2 + $0x71] sm:$0xff]
        %v727 = vld [vmem:[#allocation2 + $0x81] sm:$0xff]
        %v728 = vld [vmem:[#allocation2 + $0x91] sm:$0xff]
        %739 = vrot.lane.b32.xlu0 %v719, 4
        %v740 = vpop.permute.xlu0 %739
        %741 = vrot.lane.b32.xlu0 %v720, 4
        %v742 = vpop.permute.xlu0 %741
        %743 = vrot.lane.b32.xlu0 %v721, 4
        %v744 = vpop.permute.xlu0 %743
        %745 = vrot.lane.b32.xlu0 %v722, 4
        %v746 = vpop.permute.xlu0 %745
        %747 = vrot.lane.b32.xlu0 %v723, 4
        %v748 = vpop.permute.xlu0 %747
        %749 = vrot.lane.b32.xlu0 %v724, 4
        %v750 = vpop.permute.xlu0 %749
        %751 = vrot.lane.b32.xlu0 %v725, 4
        %v752 = vpop.permute.xlu0 %751
        %753 = vrot.lane.b32.xlu0 %v726, 4
        %v754 = vpop.permute.xlu0 %753
        %755 = vrot.lane.b32.xlu0 %v727, 4
        %v756 = vpop.permute.xlu0 %755
        %757 = vrot.lane.b32.xlu0 %v728, 4
        %v758 = vpop.permute.xlu0 %757
        %vm769 = vcmask 64544
        %770 = vst.msk [vmem:[#allocation3] sm:$0xff] %vm769, %v740
        %771 = vst.msk [vmem:[#allocation3 + $0x8] sm:$0xff] %vm769, %v742
        %772 = vst.msk [vmem:[#allocation3 + $0x10] sm:$0xff] %vm769, %v744
        %773 = vst.msk [vmem:[#allocation3 + $0x18] sm:$0xff] %vm769, %v746
        %774 = vst.msk [vmem:[#allocation3 + $0x20] sm:$0xff] %vm769, %v748
        %775 = vst.msk [vmem:[#allocation3 + $0x28] sm:$0xff] %vm769, %v750
        %776 = vst.msk [vmem:[#allocation3 + $0x30] sm:$0xff] %vm769, %v752
        %777 = vst.msk [vmem:[#allocation3 + $0x38] sm:$0xff] %vm769, %v754
        %778 = vst.msk [vmem:[#allocation3 + $0x40] sm:$0xff] %vm769, %v756
        %779 = vst.msk [vmem:[#allocation3 + $0x48] sm:$0xff] %vm769, %v758
        %v780 = vld [vmem:[#allocation2 + $0x2] sm:$0xff]
        %v781 = vld [vmem:[#allocation2 + $0x12] sm:$0xff]
        %v782 = vld [vmem:[#allocation2 + $0x22] sm:$0xff]
        %v783 = vld [vmem:[#allocation2 + $0x32] sm:$0xff]
        %v784 = vld [vmem:[#allocation2 + $0x42] sm:$0xff]
        %v785 = vld [vmem:[#allocation2 + $0x52] sm:$0xff]
        %v786 = vld [vmem:[#allocation2 + $0x62] sm:$0xff]
        %v787 = vld [vmem:[#allocation2 + $0x72] sm:$0xff]
        %v788 = vld [vmem:[#allocation2 + $0x82] sm:$0xff]
        %v789 = vld [vmem:[#allocation2 + $0x92] sm:$0xff]
        %800 = vrot.lane.b32.xlu0 %v780, 8
        %v801 = vpop.permute.xlu0 %800
        %802 = vrot.lane.b32.xlu0 %v781, 8
        %v803 = vpop.permute.xlu0 %802
        %804 = vrot.lane.b32.xlu0 %v782, 8
        %v805 = vpop.permute.xlu0 %804
        %806 = vrot.lane.b32.xlu0 %v783, 8
        %v807 = vpop.permute.xlu0 %806
        %808 = vrot.lane.b32.xlu0 %v784, 8
        %v809 = vpop.permute.xlu0 %808
        %810 = vrot.lane.b32.xlu0 %v785, 8
        %v811 = vpop.permute.xlu0 %810
        %812 = vrot.lane.b32.xlu0 %v786, 8
        %v813 = vpop.permute.xlu0 %812
        %814 = vrot.lane.b32.xlu0 %v787, 8
        %v815 = vpop.permute.xlu0 %814
        %816 = vrot.lane.b32.xlu0 %v788, 8
        %v817 = vpop.permute.xlu0 %816
        %818 = vrot.lane.b32.xlu0 %v789, 8
        %v819 = vpop.permute.xlu0 %818
        %vm830 = vcmask 97344
        %831 = vst.msk [vmem:[#allocation3] sm:$0xff] %vm830, %v801
        %832 = vst.msk [vmem:[#allocation3 + $0x8] sm:$0xff] %vm830, %v803
        %833 = vst.msk [vmem:[#allocation3 + $0x10] sm:$0xff] %vm830, %v805
        %834 = vst.msk [vmem:[#allocation3 + $0x18] sm:$0xff] %vm830, %v807
        %835 = vst.msk [vmem:[#allocation3 + $0x20] sm:$0xff] %vm830, %v809
        %836 = vst.msk [vmem:[#allocation3 + $0x28] sm:$0xff] %vm830, %v811
        %837 = vst.msk [vmem:[#allocation3 + $0x30] sm:$0xff] %vm830, %v813
        %838 = vst.msk [vmem:[#allocation3 + $0x38] sm:$0xff] %vm830, %v815
        %839 = vst.msk [vmem:[#allocation3 + $0x40] sm:$0xff] %vm830, %v817
        %840 = vst.msk [vmem:[#allocation3 + $0x48] sm:$0xff] %vm830, %v819
        %s841 = scalar_lea.vmem [#allocation2], 16
        %v842 = vld [vmem:[%s841] sm:$0xff]
        %v843 = vld [vmem:[%s841 + $0x10] sm:$0xff]
        %v844 = vld [vmem:[%s841 + $0x20] sm:$0xff]
        %v845 = vld [vmem:[%s841 + $0x30] sm:$0xff]
        %v846 = vld [vmem:[%s841 + $0x40] sm:$0xff]
        %v847 = vld [vmem:[%s841 + $0x50] sm:$0xff]
        %v848 = vld [vmem:[%s841 + $0x60] sm:$0xff]
        %v849 = vld [vmem:[%s841 + $0x70] sm:$0xff]
        %v850 = vld [vmem:[%s841 + $0x80] sm:$0xff]
        %v851 = vld [vmem:[%s841 + $0x90] sm:$0xff]
        %862 = vrot.lane.b32.xlu0 %v842, 12
        %v863 = vpop.permute.xlu0 %862
        %864 = vrot.lane.b32.xlu0 %v843, 12
        %v865 = vpop.permute.xlu0 %864
        %866 = vrot.lane.b32.xlu0 %v844, 12
        %v867 = vpop.permute.xlu0 %866
        %868 = vrot.lane.b32.xlu0 %v845, 12
        %v869 = vpop.permute.xlu0 %868
        %870 = vrot.lane.b32.xlu0 %v846, 12
        %v871 = vpop.permute.xlu0 %870
        %872 = vrot.lane.b32.xlu0 %v847, 12
        %v873 = vpop.permute.xlu0 %872
        %874 = vrot.lane.b32.xlu0 %v848, 12
        %v875 = vpop.permute.xlu0 %874
        %876 = vrot.lane.b32.xlu0 %v849, 12
        %v877 = vpop.permute.xlu0 %876
        %878 = vrot.lane.b32.xlu0 %v850, 12
        %v879 = vpop.permute.xlu0 %878
        %880 = vrot.lane.b32.xlu0 %v851, 12
        %v881 = vpop.permute.xlu0 %880
        %vm892 = vcmask 130144
        %893 = vst.msk [vmem:[#allocation3] sm:$0xff] %vm892, %v863
        %894 = vst.msk [vmem:[#allocation3 + $0x8] sm:$0xff] %vm892, %v865
        %895 = vst.msk [vmem:[#allocation3 + $0x10] sm:$0xff] %vm892, %v867
        %896 = vst.msk [vmem:[#allocation3 + $0x18] sm:$0xff] %vm892, %v869
        %897 = vst.msk [vmem:[#allocation3 + $0x20] sm:$0xff] %vm892, %v871
        %898 = vst.msk [vmem:[#allocation3 + $0x28] sm:$0xff] %vm892, %v873
        %899 = vst.msk [vmem:[#allocation3 + $0x30] sm:$0xff] %vm892, %v875
        %900 = vst.msk [vmem:[#allocation3 + $0x38] sm:$0xff] %vm892, %v877
        %901 = vst.msk [vmem:[#allocation3 + $0x40] sm:$0xff] %vm892, %v879
        %902 = vst.msk [vmem:[#allocation3 + $0x48] sm:$0xff] %vm892, %v881
        %v903 = vld [vmem:[%s841 + $0x1] sm:$0xff]
        %v904 = vld [vmem:[%s841 + $0x11] sm:$0xff]
        %v905 = vld [vmem:[%s841 + $0x21] sm:$0xff]
        %v906 = vld [vmem:[%s841 + $0x31] sm:$0xff]
        %v907 = vld [vmem:[%s841 + $0x41] sm:$0xff]
        %v908 = vld [vmem:[%s841 + $0x51] sm:$0xff]
        %v909 = vld [vmem:[%s841 + $0x61] sm:$0xff]
        %v910 = vld [vmem:[%s841 + $0x71] sm:$0xff]
        %v911 = vld [vmem:[%s841 + $0x81] sm:$0xff]
        %v912 = vld [vmem:[%s841 + $0x91] sm:$0xff]
        %923 = vrot.lane.b32.xlu0 %v903, 16
        %v924 = vpop.permute.xlu0 %923
        %925 = vrot.lane.b32.xlu0 %v904, 16
        %v926 = vpop.permute.xlu0 %925
        %927 = vrot.lane.b32.xlu0 %v905, 16
        %v928 = vpop.permute.xlu0 %927
        %929 = vrot.lane.b32.xlu0 %v906, 16
        %v930 = vpop.permute.xlu0 %929
        %931 = vrot.lane.b32.xlu0 %v907, 16
        %v932 = vpop.permute.xlu0 %931
        %933 = vrot.lane.b32.xlu0 %v908, 16
        %v934 = vpop.permute.xlu0 %933
        %935 = vrot.lane.b32.xlu0 %v909, 16
        %v936 = vpop.permute.xlu0 %935
        %937 = vrot.lane.b32.xlu0 %v910, 16
        %v938 = vpop.permute.xlu0 %937
        %939 = vrot.lane.b32.xlu0 %v911, 16
        %v940 = vpop.permute.xlu0 %939
        %941 = vrot.lane.b32.xlu0 %v912, 16
        %v942 = vpop.permute.xlu0 %941
        %vm953 = vcmask 162944
        %954 = vst.msk [vmem:[#allocation3] sm:$0xff] %vm953, %v924
        %955 = vst.msk [vmem:[#allocation3 + $0x8] sm:$0xff] %vm953, %v926
        %956 = vst.msk [vmem:[#allocation3 + $0x10] sm:$0xff] %vm953, %v928
        %957 = vst.msk [vmem:[#allocation3 + $0x18] sm:$0xff] %vm953, %v930
        %958 = vst.msk [vmem:[#allocation3 + $0x20] sm:$0xff] %vm953, %v932
        %959 = vst.msk [vmem:[#allocation3 + $0x28] sm:$0xff] %vm953, %v934
        %960 = vst.msk [vmem:[#allocation3 + $0x30] sm:$0xff] %vm953, %v936
        %961 = vst.msk [vmem:[#allocation3 + $0x38] sm:$0xff] %vm953, %v938
        %962 = vst.msk [vmem:[#allocation3 + $0x40] sm:$0xff] %vm953, %v940
        %963 = vst.msk [vmem:[#allocation3 + $0x48] sm:$0xff] %vm953, %v942
        %v964 = vld [vmem:[%s841 + $0x2] sm:$0xff]
        %v965 = vld [vmem:[%s841 + $0x12] sm:$0xff]
        %v966 = vld [vmem:[%s841 + $0x22] sm:$0xff]
        %v967 = vld [vmem:[%s841 + $0x32] sm:$0xff]
        %v968 = vld [vmem:[%s841 + $0x42] sm:$0xff]
        %v969 = vld [vmem:[%s841 + $0x52] sm:$0xff]
        %v970 = vld [vmem:[%s841 + $0x62] sm:$0xff]
        %v971 = vld [vmem:[%s841 + $0x72] sm:$0xff]
        %v972 = vld [vmem:[%s841 + $0x82] sm:$0xff]
        %v973 = vld [vmem:[%s841 + $0x92] sm:$0xff]
        %984 = vrot.lane.b32.xlu0 %v964, 20
        %v985 = vpop.permute.xlu0 %984
        %986 = vrot.lane.b32.xlu0 %v965, 20
        %v987 = vpop.permute.xlu0 %986
        %988 = vrot.lane.b32.xlu0 %v966, 20
        %v989 = vpop.permute.xlu0 %988
        %990 = vrot.lane.b32.xlu0 %v967, 20
        %v991 = vpop.permute.xlu0 %990
        %992 = vrot.lane.b32.xlu0 %v968, 20
        %v993 = vpop.permute.xlu0 %992
        %994 = vrot.lane.b32.xlu0 %v969, 20
        %v995 = vpop.permute.xlu0 %994
        %996 = vrot.lane.b32.xlu0 %v970, 20
        %v997 = vpop.permute.xlu0 %996
        %998 = vrot.lane.b32.xlu0 %v971, 20
        %v999 = vpop.permute.xlu0 %998
        %1000 = vrot.lane.b32.xlu0 %v972, 20
        %v1001 = vpop.permute.xlu0 %1000
        %1002 = vrot.lane.b32.xlu0 %v973, 20
        %v1003 = vpop.permute.xlu0 %1002
        %vm1014 = vcmask 195744
        %1015 = vst.msk [vmem:[#allocation3] sm:$0xff] %vm1014, %v985
        %1016 = vst.msk [vmem:[#allocation3 + $0x8] sm:$0xff] %vm1014, %v987
        %1017 = vst.msk [vmem:[#allocation3 + $0x10] sm:$0xff] %vm1014, %v989
        %1018 = vst.msk [vmem:[#allocation3 + $0x18] sm:$0xff] %vm1014, %v991
        %1019 = vst.msk [vmem:[#allocation3 + $0x20] sm:$0xff] %vm1014, %v993
        %1020 = vst.msk [vmem:[#allocation3 + $0x28] sm:$0xff] %vm1014, %v995
        %1021 = vst.msk [vmem:[#allocation3 + $0x30] sm:$0xff] %vm1014, %v997
        %1022 = vst.msk [vmem:[#allocation3 + $0x38] sm:$0xff] %vm1014, %v999
        %1023 = vst.msk [vmem:[#allocation3 + $0x40] sm:$0xff] %vm1014, %v1001
        %1024 = vst.msk [vmem:[#allocation3 + $0x48] sm:$0xff] %vm1014, %v1003
        %v1025 = vld [vmem:[%s619] sm:$0xff]
        %v1026 = vld [vmem:[%s619 + $0x10] sm:$0xff]
        %v1027 = vld [vmem:[%s619 + $0x20] sm:$0xff]
        %v1028 = vld [vmem:[%s619 + $0x30] sm:$0xff]
        %v1029 = vld [vmem:[%s619 + $0x40] sm:$0xff]
        %v1030 = vld [vmem:[%s619 + $0x50] sm:$0xff]
        %v1031 = vld [vmem:[%s619 + $0x60] sm:$0xff]
        %v1032 = vld [vmem:[%s619 + $0x70] sm:$0xff]
        %v1033 = vld [vmem:[%s619 + $0x80] sm:$0xff]
        %v1034 = vld [vmem:[%s619 + $0x90] sm:$0xff]
        %1045 = vrot.lane.b32.xlu0 %v1025, 24
        %v1046 = vpop.permute.xlu0 %1045
        %1047 = vrot.lane.b32.xlu0 %v1026, 24
        %v1048 = vpop.permute.xlu0 %1047
        %1049 = vrot.lane.b32.xlu0 %v1027, 24
        %v1050 = vpop.permute.xlu0 %1049
        %1051 = vrot.lane.b32.xlu0 %v1028, 24
        %v1052 = vpop.permute.xlu0 %1051
        %1053 = vrot.lane.b32.xlu0 %v1029, 24
        %v1054 = vpop.permute.xlu0 %1053
        %1055 = vrot.lane.b32.xlu0 %v1030, 24
        %v1056 = vpop.permute.xlu0 %1055
        %1057 = vrot.lane.b32.xlu0 %v1031, 24
        %v1058 = vpop.permute.xlu0 %1057
        %1059 = vrot.lane.b32.xlu0 %v1032, 24
        %v1060 = vpop.permute.xlu0 %1059
        %1061 = vrot.lane.b32.xlu0 %v1033, 24
        %v1062 = vpop.permute.xlu0 %1061
        %1063 = vrot.lane.b32.xlu0 %v1034, 24
        %v1064 = vpop.permute.xlu0 %1063
        %vm1075 = vcmask 228544
        %1076 = vst.msk [vmem:[#allocation3] sm:$0xff] %vm1075, %v1046
        %1077 = vst.msk [vmem:[#allocation3 + $0x8] sm:$0xff] %vm1075, %v1048
        %1078 = vst.msk [vmem:[#allocation3 + $0x10] sm:$0xff] %vm1075, %v1050
        %1079 = vst.msk [vmem:[#allocation3 + $0x18] sm:$0xff] %vm1075, %v1052
        %1080 = vst.msk [vmem:[#allocation3 + $0x20] sm:$0xff] %vm1075, %v1054
        %1081 = vst.msk [vmem:[#allocation3 + $0x28] sm:$0xff] %vm1075, %v1056
        %1082 = vst.msk [vmem:[#allocation3 + $0x30] sm:$0xff] %vm1075, %v1058
        %1083 = vst.msk [vmem:[#allocation3 + $0x38] sm:$0xff] %vm1075, %v1060
        %1084 = vst.msk [vmem:[#allocation3 + $0x40] sm:$0xff] %vm1075, %v1062
        %1085 = vst.msk [vmem:[#allocation3 + $0x48] sm:$0xff] %vm1075, %v1064
        %v1086 = vld [vmem:[%s619 + $0x1] sm:$0xff]
        %v1087 = vld [vmem:[%s619 + $0x11] sm:$0xff]
        %v1088 = vld [vmem:[%s619 + $0x21] sm:$0xff]
        %v1089 = vld [vmem:[%s619 + $0x31] sm:$0xff]
        %v1090 = vld [vmem:[%s619 + $0x41] sm:$0xff]
        %v1091 = vld [vmem:[%s619 + $0x51] sm:$0xff]
        %v1092 = vld [vmem:[%s619 + $0x61] sm:$0xff]
        %v1093 = vld [vmem:[%s619 + $0x71] sm:$0xff]
        %v1094 = vld [vmem:[%s619 + $0x81] sm:$0xff]
        %v1095 = vld [vmem:[%s619 + $0x91] sm:$0xff]
        %1106 = vrot.lane.b32.xlu0 %v1086, 28
        %v1107 = vpop.permute.xlu0 %1106
        %1108 = vrot.lane.b32.xlu0 %v1087, 28
        %v1109 = vpop.permute.xlu0 %1108
        %1110 = vrot.lane.b32.xlu0 %v1088, 28
        %v1111 = vpop.permute.xlu0 %1110
        %1112 = vrot.lane.b32.xlu0 %v1089, 28
        %v1113 = vpop.permute.xlu0 %1112
        %1114 = vrot.lane.b32.xlu0 %v1090, 28
        %v1115 = vpop.permute.xlu0 %1114
        %1116 = vrot.lane.b32.xlu0 %v1091, 28
        %v1117 = vpop.permute.xlu0 %1116
        %1118 = vrot.lane.b32.xlu0 %v1092, 28
        %v1119 = vpop.permute.xlu0 %1118
        %1120 = vrot.lane.b32.xlu0 %v1093, 28
        %v1121 = vpop.permute.xlu0 %1120
        %1122 = vrot.lane.b32.xlu0 %v1094, 28
        %v1123 = vpop.permute.xlu0 %1122
        %1124 = vrot.lane.b32.xlu0 %v1095, 28
        %v1125 = vpop.permute.xlu0 %1124
        %vm1136 = vcmask 261344
        %1137 = vst.msk [vmem:[#allocation3] sm:$0xff] %vm1136, %v1107
        %1138 = vst.msk [vmem:[#allocation3 + $0x8] sm:$0xff] %vm1136, %v1109
        %1139 = vst.msk [vmem:[#allocation3 + $0x10] sm:$0xff] %vm1136, %v1111
        %1140 = vst.msk [vmem:[#allocation3 + $0x18] sm:$0xff] %vm1136, %v1113
        %1141 = vst.msk [vmem:[#allocation3 + $0x20] sm:$0xff] %vm1136, %v1115
        %1142 = vst.msk [vmem:[#allocation3 + $0x28] sm:$0xff] %vm1136, %v1117
        %1143 = vst.msk [vmem:[#allocation3 + $0x30] sm:$0xff] %vm1136, %v1119
        %1144 = vst.msk [vmem:[#allocation3 + $0x38] sm:$0xff] %vm1136, %v1121
        %1145 = vst.msk [vmem:[#allocation3 + $0x40] sm:$0xff] %vm1136, %v1123
        %1146 = vst.msk [vmem:[#allocation3 + $0x48] sm:$0xff] %vm1136, %v1125
        %v1147 = vld [vmem:[%s619 + $0x2] sm:$0xff]
        %v1148 = vld [vmem:[%s619 + $0x12] sm:$0xff]
        %v1149 = vld [vmem:[%s619 + $0x22] sm:$0xff]
        %v1150 = vld [vmem:[%s619 + $0x32] sm:$0xff]
        %v1151 = vld [vmem:[%s619 + $0x42] sm:$0xff]
        %v1152 = vld [vmem:[%s619 + $0x52] sm:$0xff]
        %v1153 = vld [vmem:[%s619 + $0x62] sm:$0xff]
        %v1154 = vld [vmem:[%s619 + $0x72] sm:$0xff]
        %v1155 = vld [vmem:[%s619 + $0x82] sm:$0xff]
        %v1156 = vld [vmem:[%s619 + $0x92] sm:$0xff]
        %1167 = vrot.lane.b32.xlu0 %v1147, 32
        %v1168 = vpop.permute.xlu0 %1167
        %1169 = vrot.lane.b32.xlu0 %v1148, 32
        %v1170 = vpop.permute.xlu0 %1169
        %1171 = vrot.lane.b32.xlu0 %v1149, 32
        %v1172 = vpop.permute.xlu0 %1171
        %1173 = vrot.lane.b32.xlu0 %v1150, 32
        %v1174 = vpop.permute.xlu0 %1173
        %1175 = vrot.lane.b32.xlu0 %v1151, 32
        %v1176 = vpop.permute.xlu0 %1175
        %1177 = vrot.lane.b32.xlu0 %v1152, 32
        %v1178 = vpop.permute.xlu0 %1177
        %1179 = vrot.lane.b32.xlu0 %v1153, 32
        %v1180 = vpop.permute.xlu0 %1179
        %1181 = vrot.lane.b32.xlu0 %v1154, 32
        %v1182 = vpop.permute.xlu0 %1181
        %1183 = vrot.lane.b32.xlu0 %v1155, 32
        %v1184 = vpop.permute.xlu0 %1183
        %1185 = vrot.lane.b32.xlu0 %v1156, 32
        %v1186 = vpop.permute.xlu0 %1185
        %vm1197 = vcmask 294144
        %1198 = vst.msk [vmem:[#allocation3] sm:$0xff] %vm1197, %v1168
        %1199 = vst.msk [vmem:[#allocation3 + $0x8] sm:$0xff] %vm1197, %v1170
        %1200 = vst.msk [vmem:[#allocation3 + $0x10] sm:$0xff] %vm1197, %v1172
        %1201 = vst.msk [vmem:[#allocation3 + $0x18] sm:$0xff] %vm1197, %v1174
        %1202 = vst.msk [vmem:[#allocation3 + $0x20] sm:$0xff] %vm1197, %v1176
        %1203 = vst.msk [vmem:[#allocation3 + $0x28] sm:$0xff] %vm1197, %v1178
        %1204 = vst.msk [vmem:[#allocation3 + $0x30] sm:$0xff] %vm1197, %v1180
        %1205 = vst.msk [vmem:[#allocation3 + $0x38] sm:$0xff] %vm1197, %v1182
        %1206 = vst.msk [vmem:[#allocation3 + $0x40] sm:$0xff] %vm1197, %v1184
        %1207 = vst.msk [vmem:[#allocation3 + $0x48] sm:$0xff] %vm1197, %v1186
        %v1208 = vld [vmem:[#allocation3] sm:$0xff]
        %v1209 = vld [vmem:[#allocation3 + $0x8] sm:$0xff]
        %v1210 = vld [vmem:[#allocation3 + $0x10] sm:$0xff]
        %v1211 = vld [vmem:[#allocation3 + $0x18] sm:$0xff]
        %v1212 = vld [vmem:[#allocation3 + $0x20] sm:$0xff]
        %v1213 = vld [vmem:[#allocation3 + $0x28] sm:$0xff]
        %v1214 = vld [vmem:[#allocation3 + $0x30] sm:$0xff]
        %v1215 = vld [vmem:[#allocation3 + $0x38] sm:$0xff]
        %v1216 = vld [vmem:[#allocation3 + $0x40] sm:$0xff]
        %v1217 = vld [vmem:[#allocation3 + $0x48] sm:$0xff]
        %v1218 = vld [vmem:[%s3] sm:$0xff]
        %v1219 = vld [vmem:[%s3 + $0x8] sm:$0xff]
        %v1220 = vld [vmem:[%s3 + $0x10] sm:$0xff]
        %v1221 = vld [vmem:[%s3 + $0x18] sm:$0xff]
        %v1222 = vld [vmem:[%s3 + $0x20] sm:$0xf]
        %vm1223 = vcmask 293888
        %v1225 = vsel %vm1223, %v1208, 0
        %v1228 = vsel %vm1223, %v1209, 0
        %v1231 = vsel %vm1223, %v1210, 0
        %v1234 = vsel %vm1223, %v1211, 0
        %v1237 = vsel %vm1223, %v1212, 0
        %v1240 = vsel %vm1223, %v1213, 0
        %v1243 = vsel %vm1223, %v1214, 0
        %v1246 = vsel %vm1223, %v1215, 0
        %v1249 = vsel %vm1223, %v1216, 0
        %v1252 = vsel %vm1223, %v1217, 0
        %vm1254 = vcmask 1043456
        %v1256 = vsel %vm1254, %v1222, 0
        %1258 = vmatprep.subr.mxu0 0.0
        %1259 = vmatpush1.msra.mxu0 %v1218
        %1260 = vmatprep.subr.mxu0 0.0
        %1261 = vmatpush1.msra.mxu0 %v1219
        %1262 = vmatprep.subr.mxu0 0.0
        %1263 = vmatpush1.msra.mxu0 %v1220
        %1264 = vmatprep.subr.mxu0 0.0
        %1265 = vmatpush1.msra.mxu0 %v1221
        %1266 = vmatprep.subr.mxu0 0.0
        %1267 = vmatpush1.msra.mxu0 %v1256
        %1268 = vmatprep.subr.mxu0 0.0
        %1269 = vmatpush1.msra.mxu0 0.0
        %1270 = vmatprep.subr.mxu0 0.0
        %1271 = vmatpush1.msra.mxu0 0.0
        %1272 = vmatprep.subr.mxu0 0.0
        %1273 = vmatpush1.msra.mxu0 0.0
        %1274 = vmatprep.subr.mxu0 0.0
        %1275 = vmatpush1.msra.mxu0 0.0
        %1276 = vmatprep.subr.mxu0 0.0
        %1277 = vmatpush1.msra.mxu0 0.0
        %1278 = vmatprep.subr.mxu0 0.0
        %1279 = vmatpush1.msra.mxu0 0.0
        %1280 = vmatprep.subr.mxu0 0.0
        %1281 = vmatpush1.msra.mxu0 0.0
        %1282 = vmatprep.subr.mxu0 0.0
        %1283 = vmatpush1.msra.mxu0 0.0
        %1284 = vmatprep.subr.mxu0 0.0
        %1285 = vmatpush1.msra.mxu0 0.0
        %1286 = vmatprep.subr.mxu0 0.0
        %1287 = vmatpush1.msra.mxu0 0.0
        %1288 = vmatprep.subr.mxu0 0.0
        %1289 = vmatpush1.msra.mxu0 0.0
        %1290 = vmatprep.subr.mxu0 0.0
        %1291 = vmatpush1.msra.mxu0 0.0
        %1292 = vmatprep.subr.mxu0 0.0
        %1293 = vmatpush1.msra.mxu0 0.0
        %1294 = vmatprep.subr.mxu0 0.0
        %1295 = vmatpush1.msra.mxu0 0.0
        %1296 = vmatprep.subr.mxu0 0.0
        %1297 = vmatpush1.msra.mxu0 0.0
        %1298 = vmatprep.subr.mxu0 0.0
        %1299 = vmatpush1.msra.mxu0 0.0
        %1300 = vmatprep.subr.mxu0 0.0
        %1301 = vmatpush1.msra.mxu0 0.0
        %1302 = vmatprep.subr.mxu0 0.0
        %1303 = vmatpush1.msra.mxu0 0.0
        %1304 = vmatprep.subr.mxu0 0.0
        %1305 = vmatpush1.msra.mxu0 0.0
        %1306 = vmatprep.subr.mxu0 0.0
        %1307 = vmatpush1.msra.mxu0 0.0
        %1308 = vmatprep.subr.mxu0 0.0
        %1309 = vmatpush1.msra.mxu0 0.0
        %1310 = vmatprep.subr.mxu0 0.0
        %1311 = vmatpush1.msra.mxu0 0.0
        %1312 = vmatprep.subr.mxu0 0.0
        %1313 = vmatpush1.msra.mxu0 0.0
        %1314 = vmatprep.subr.mxu0 0.0
        %1315 = vmatpush1.msra.mxu0 0.0
        %1316 = vmatprep.subr.mxu0 0.0
        %1317 = vmatpush1.msra.mxu0 0.0
        %1318 = vmatprep.subr.mxu0 0.0
        %1319 = vmatpush1.msra.mxu0 0.0
        %1320 = vmatprep.subr.mxu0 0.0
        %1321 = vmatpush1.msra.mxu0 0.0
        %1322 = vmatprep.mubr.f32.mxu0 0.0
        %1323 = vmatmul.mubr.f32.gmra.mrb[0].mxu0 %v1225
        %v1324 = vpop.f32.mrb[0].mxu0
        %v1325 = vadd.f32 0.0, %v1324
        %v1326 = vpop.f32.mrb[0].mxu0
        %1327 = vmatprep.mubr.f32.mxu0 0.0
        %1328 = vmatmul.mubr.f32.gmra.mrb[0].mxu0 %v1228
        %v1329 = vpop.f32.mrb[0].mxu0
        %v1330 = vadd.f32 0.0, %v1329
        %v1331 = vpop.f32.mrb[0].mxu0
        %1332 = vmatprep.mubr.f32.mxu0 0.0
        %1333 = vmatmul.mubr.f32.gmra.mrb[0].mxu0 %v1231
        %v1334 = vpop.f32.mrb[0].mxu0
        %v1335 = vadd.f32 0.0, %v1334
        %v1336 = vpop.f32.mrb[0].mxu0
        %1337 = vmatprep.mubr.f32.mxu0 0.0
        %1338 = vmatmul.mubr.f32.gmra.mrb[0].mxu0 %v1234
        %v1339 = vpop.f32.mrb[0].mxu0
        %v1340 = vadd.f32 0.0, %v1339
        %v1341 = vpop.f32.mrb[0].mxu0
        %1342 = vmatprep.mubr.f32.mxu0 0.0
        %1343 = vmatmul.mubr.f32.gmra.mrb[0].mxu0 %v1237
        %v1344 = vpop.f32.mrb[0].mxu0
        %v1345 = vadd.f32 0.0, %v1344
        %v1346 = vpop.f32.mrb[0].mxu0
        %1347 = vmatprep.mubr.f32.mxu0 0.0
        %1348 = vmatmul.mubr.f32.gmra.mrb[0].mxu0 %v1240
        %v1349 = vpop.f32.mrb[0].mxu0
        %v1350 = vadd.f32 0.0, %v1349
        %v1351 = vpop.f32.mrb[0].mxu0
        %1352 = vmatprep.mubr.f32.mxu0 0.0
        %1353 = vmatmul.mubr.f32.gmra.mrb[0].mxu0 %v1243
        %v1354 = vpop.f32.mrb[0].mxu0
        %v1355 = vadd.f32 0.0, %v1354
        %v1356 = vpop.f32.mrb[0].mxu0
        %1357 = vmatprep.mubr.f32.mxu0 0.0
        %1358 = vmatmul.mubr.f32.gmra.mrb[0].mxu0 %v1246
        %v1359 = vpop.f32.mrb[0].mxu0
        %v1360 = vadd.f32 0.0, %v1359
        %v1361 = vpop.f32.mrb[0].mxu0
        %1362 = vmatprep.mubr.f32.mxu0 0.0
        %1363 = vmatmul.mubr.f32.gmra.mrb[0].mxu0 %v1249
        %v1364 = vpop.f32.mrb[0].mxu0
        %v1365 = vadd.f32 0.0, %v1364
        %v1366 = vpop.f32.mrb[0].mxu0
        %1367 = vmatprep.mubr.f32.mxu0 0.0
        %1368 = vmatmul.mubr.f32.gmra.mrb[0].mxu0 %v1252
        %v1369 = vpop.f32.mrb[0].mxu0
        %v1370 = vadd.f32 0.0, %v1369
        %v1371 = vpop.f32.mrb[0].mxu0
        %1372 = vdwg.mxu0
        %v1373 = vld [vmem:[%s4] sm:$0x1]
        %v1374 = vlaneseq
        %v1375 = vshrl.u32 %v1374, 7
        %v1376 = vsub.s32 0, %v1375
        %v1377 = vrot.slane %v1373, %v1376
        %v1378 = vmul.f32 %v1325, %v1377
        %v1379 = vmul.f32 %v1330, %v1377
        %v1380 = vmul.f32 %v1335, %v1377
        %v1381 = vmul.f32 %v1340, %v1377
        %v1382 = vmul.f32 %v1345, %v1377
        %v1383 = vmul.f32 %v1350, %v1377
        %v1384 = vmul.f32 %v1355, %v1377
        %v1385 = vmul.f32 %v1360, %v1377
        %v1386 = vmul.f32 %v1365, %v1377
        %v1387 = vmul.f32 %v1370, %v1377
        %v1388 = vld [vmem:[%s4 + $0x1] sm:$0x1]
        %v1389 = vlaneseq
        %v1390 = vshrl.u32 %v1389, 7
        %v1391 = vsub.s32 0, %v1390
        %v1392 = vrot.slane %v1388, %v1391
        %v1393 = vadd.f32 %v1378, %v1392
        %v1394 = vadd.f32 %v1379, %v1392
        %v1395 = vadd.f32 %v1380, %v1392
        %v1396 = vadd.f32 %v1381, %v1392
        %v1397 = vadd.f32 %v1382, %v1392
        %v1398 = vadd.f32 %v1383, %v1392
        %v1399 = vadd.f32 %v1384, %v1392
        %v1400 = vadd.f32 %v1385, %v1392
        %v1401 = vadd.f32 %v1386, %v1392
        %v1402 = vadd.f32 %v1387, %v1392
        %v1403 = vmax.f32 %v1393, 0.0
        %v1404 = vmax.f32 %v1394, 0.0
        %v1405 = vmax.f32 %v1395, 0.0
        %v1406 = vmax.f32 %v1396, 0.0
        %v1407 = vmax.f32 %v1397, 0.0
        %v1408 = vmax.f32 %v1398, 0.0
        %v1409 = vmax.f32 %v1399, 0.0
        %v1410 = vmax.f32 %v1400, 0.0
        %v1411 = vmax.f32 %v1401, 0.0
        %v1412 = vmax.f32 %v1402, 0.0
        %vm1413 = vcmask 57344
        %1414 = vst.msk [vmem:[#allocation4] sm:$0x1] %vm1413, 0.0
        %1415 = vst.msk [vmem:[#allocation4 + $0x10] sm:$0x1] %vm1413, 0.0
        %1416 = vst.msk [vmem:[#allocation4 + $0x20] sm:$0x1] %vm1413, 0.0
        %1417 = vst.msk [vmem:[#allocation4 + $0x30] sm:$0x1] %vm1413, 0.0
        %1418 = vst.msk [vmem:[#allocation4 + $0x40] sm:$0x1] %vm1413, 0.0
        %1419 = vst.msk [vmem:[#allocation4 + $0x50] sm:$0x1] %vm1413, 0.0
        %1420 = vst.msk [vmem:[#allocation4 + $0x60] sm:$0x1] %vm1413, 0.0
        %1421 = vst.msk [vmem:[#allocation4 + $0x70] sm:$0x1] %vm1413, 0.0
        %1422 = vst.msk [vmem:[#allocation4 + $0x80] sm:$0x1] %vm1413, 0.0
        %1423 = vst.msk [vmem:[#allocation4 + $0x90] sm:$0x1] %vm1413, 0.0
        %1424 = vst.msk [vmem:[#allocation4 + $0x9] sm:$0x1] %vm1413, 0.0
        %1425 = vst.msk [vmem:[#allocation4 + $0x19] sm:$0x1] %vm1413, 0.0
        %1426 = vst.msk [vmem:[#allocation4 + $0x29] sm:$0x1] %vm1413, 0.0
        %1427 = vst.msk [vmem:[#allocation4 + $0x39] sm:$0x1] %vm1413, 0.0
        %1428 = vst.msk [vmem:[#allocation4 + $0x49] sm:$0x1] %vm1413, 0.0
        %1429 = vst.msk [vmem:[#allocation4 + $0x59] sm:$0x1] %vm1413, 0.0
        %1430 = vst.msk [vmem:[#allocation4 + $0x69] sm:$0x1] %vm1413, 0.0
        %1431 = vst.msk [vmem:[#allocation4 + $0x79] sm:$0x1] %vm1413, 0.0
        %1432 = vst.msk [vmem:[#allocation4 + $0x89] sm:$0x1] %vm1413, 0.0
        %1433 = vst.msk [vmem:[#allocation4 + $0x99] sm:$0x1] %vm1413, 0.0
        %vm1434 = vcmask 64512
        %1435 = vst.msk [vmem:[#allocation4 + $0x1] sm:$0xff] %vm1434, %v1403
        %1436 = vst.msk [vmem:[#allocation4 + $0x11] sm:$0xff] %vm1434, %v1404
        %1437 = vst.msk [vmem:[#allocation4 + $0x21] sm:$0xff] %vm1434, %v1405
        %1438 = vst.msk [vmem:[#allocation4 + $0x31] sm:$0xff] %vm1434, %v1406
        %1439 = vst.msk [vmem:[#allocation4 + $0x41] sm:$0xff] %vm1434, %v1407
        %1440 = vst.msk [vmem:[#allocation4 + $0x51] sm:$0xff] %vm1434, %v1408
        %1441 = vst.msk [vmem:[#allocation4 + $0x61] sm:$0xff] %vm1434, %v1409
        %1442 = vst.msk [vmem:[#allocation4 + $0x71] sm:$0xff] %vm1434, %v1410
        %1443 = vst.msk [vmem:[#allocation4 + $0x81] sm:$0xff] %vm1434, %v1411
        %1444 = vst.msk [vmem:[#allocation4 + $0x91] sm:$0xff] %vm1434, %v1412
        // Predicated region
        $region57: #{tpu_custom_call.1} parent=51 // pred_check
          %p1445 = pneg %p686
        $region58: #{tpu_custom_call.1} parent=51 // pred_check_branch
          %1447 = sbr.rel (%p1445) target = $region60
        $region59: #{tpu_custom_call.1} parent=51 // pred_region
          %1448 = vst.msk [vmem:[#allocation4] sm:$0xff] %vm1434, 0.0
          %vm1449 = vcmask 58368
          %1450 = vst.msk [vmem:[#allocation4 + $0x8] sm:$0x3] %vm1449, 0.0
          %s1451 = scalar_lea.vmem [#allocation4], 144
          %1452 = vst.msk [vmem:[%s1451] sm:$0xff] %vm1434, 0.0
          %1453 = vst.msk [vmem:[%s1451 + $0x8] sm:$0x3] %vm1449, 0.0
        $region60: #{tpu_custom_call.1} parent=51 // pred_fallthru
          _
        %v1454 = vld [vmem:[#allocation4] sm:$0xff]
        %v1455 = vld [vmem:[#allocation4 + $0x10] sm:$0xff]
        %v1456 = vld [vmem:[#allocation4 + $0x20] sm:$0xff]
        %v1457 = vld [vmem:[#allocation4 + $0x30] sm:$0xff]
        %v1458 = vld [vmem:[#allocation4 + $0x40] sm:$0xff]
        %v1459 = vld [vmem:[#allocation4 + $0x50] sm:$0xff]
        %v1460 = vld [vmem:[#allocation4 + $0x60] sm:$0xff]
        %v1461 = vld [vmem:[#allocation4 + $0x70] sm:$0xff]
        %v1462 = vld [vmem:[%s5] sm:$0x1]
        %v1463 = vlaneseq
        %v1464 = vshrl.u32 %v1463, 7
        %v1465 = vsub.s32 0, %v1464
        %v1466 = vrot.slane %v1462, %v1465
        %v1467 = vmul.f32 %v1454, %v1466
        %v1468 = vmul.f32 %v1455, %v1466
        %v1469 = vmul.f32 %v1456, %v1466
        %v1470 = vmul.f32 %v1457, %v1466
        %v1471 = vmul.f32 %v1458, %v1466
        %v1472 = vmul.f32 %v1459, %v1466
        %v1473 = vmul.f32 %v1460, %v1466
        %v1474 = vmul.f32 %v1461, %v1466
        %v1475 = vld [vmem:[#allocation4 + $0x1] sm:$0xff]
        %v1476 = vld [vmem:[#allocation4 + $0x11] sm:$0xff]
        %v1477 = vld [vmem:[#allocation4 + $0x21] sm:$0xff]
        %v1478 = vld [vmem:[#allocation4 + $0x31] sm:$0xff]
        %v1479 = vld [vmem:[#allocation4 + $0x41] sm:$0xff]
        %v1480 = vld [vmem:[#allocation4 + $0x51] sm:$0xff]
        %v1481 = vld [vmem:[#allocation4 + $0x61] sm:$0xff]
        %v1482 = vld [vmem:[#allocation4 + $0x71] sm:$0xff]
        %v1483 = vld [vmem:[%s5 + $0x1] sm:$0x1]
        %v1484 = vlaneseq
        %v1485 = vshrl.u32 %v1484, 7
        %v1486 = vsub.s32 0, %v1485
        %v1487 = vrot.slane %v1483, %v1486
        %v1488 = vmul.f32 %v1475, %v1487
        %v1489 = vmul.f32 %v1476, %v1487
        %v1490 = vmul.f32 %v1477, %v1487
        %v1491 = vmul.f32 %v1478, %v1487
        %v1492 = vmul.f32 %v1479, %v1487
        %v1493 = vmul.f32 %v1480, %v1487
        %v1494 = vmul.f32 %v1481, %v1487
        %v1495 = vmul.f32 %v1482, %v1487
        %v1496 = vadd.f32 %v1467, %v1488
        %v1497 = vadd.f32 %v1468, %v1489
        %v1498 = vadd.f32 %v1469, %v1490
        %v1499 = vadd.f32 %v1470, %v1491
        %v1500 = vadd.f32 %v1471, %v1492
        %v1501 = vadd.f32 %v1472, %v1493
        %v1502 = vadd.f32 %v1473, %v1494
        %v1503 = vadd.f32 %v1474, %v1495
        %v1504 = vld [vmem:[#allocation4 + $0x2] sm:$0xff]
        %v1505 = vld [vmem:[#allocation4 + $0x12] sm:$0xff]
        %v1506 = vld [vmem:[#allocation4 + $0x22] sm:$0xff]
        %v1507 = vld [vmem:[#allocation4 + $0x32] sm:$0xff]
        %v1508 = vld [vmem:[#allocation4 + $0x42] sm:$0xff]
        %v1509 = vld [vmem:[#allocation4 + $0x52] sm:$0xff]
        %v1510 = vld [vmem:[#allocation4 + $0x62] sm:$0xff]
        %v1511 = vld [vmem:[#allocation4 + $0x72] sm:$0xff]
        %v1512 = vld [vmem:[%s5 + $0x2] sm:$0x1]
        %v1513 = vlaneseq
        %v1514 = vshrl.u32 %v1513, 7
        %v1515 = vsub.s32 0, %v1514
        %v1516 = vrot.slane %v1512, %v1515
        %v1517 = vmul.f32 %v1504, %v1516
        %v1518 = vmul.f32 %v1505, %v1516
        %v1519 = vmul.f32 %v1506, %v1516
        %v1520 = vmul.f32 %v1507, %v1516
        %v1521 = vmul.f32 %v1508, %v1516
        %v1522 = vmul.f32 %v1509, %v1516
        %v1523 = vmul.f32 %v1510, %v1516
        %v1524 = vmul.f32 %v1511, %v1516
        %v1525 = vadd.f32 %v1496, %v1517
        %v1526 = vadd.f32 %v1497, %v1518
        %v1527 = vadd.f32 %v1498, %v1519
        %v1528 = vadd.f32 %v1499, %v1520
        %v1529 = vadd.f32 %v1500, %v1521
        %v1530 = vadd.f32 %v1501, %v1522
        %v1531 = vadd.f32 %v1502, %v1523
        %v1532 = vadd.f32 %v1503, %v1524
        %s1533 = scalar_lea.vmem [#allocation4], 16
        %v1534 = vld [vmem:[%s1533] sm:$0xff]
        %v1535 = vld [vmem:[%s1533 + $0x10] sm:$0xff]
        %v1536 = vld [vmem:[%s1533 + $0x20] sm:$0xff]
        %v1537 = vld [vmem:[%s1533 + $0x30] sm:$0xff]
        %v1538 = vld [vmem:[%s1533 + $0x40] sm:$0xff]
        %v1539 = vld [vmem:[%s1533 + $0x50] sm:$0xff]
        %v1540 = vld [vmem:[%s1533 + $0x60] sm:$0xff]
        %v1541 = vld [vmem:[%s1533 + $0x70] sm:$0xff]
        %v1542 = vld [vmem:[%s5 + $0x3] sm:$0x1]
        %v1543 = vlaneseq
        %v1544 = vshrl.u32 %v1543, 7
        %v1545 = vsub.s32 0, %v1544
        %v1546 = vrot.slane %v1542, %v1545
        %v1547 = vmul.f32 %v1534, %v1546
        %v1548 = vmul.f32 %v1535, %v1546
        %v1549 = vmul.f32 %v1536, %v1546
        %v1550 = vmul.f32 %v1537, %v1546
        %v1551 = vmul.f32 %v1538, %v1546
        %v1552 = vmul.f32 %v1539, %v1546
        %v1553 = vmul.f32 %v1540, %v1546
        %v1554 = vmul.f32 %v1541, %v1546
        %v1555 = vadd.f32 %v1525, %v1547
        %v1556 = vadd.f32 %v1526, %v1548
        %v1557 = vadd.f32 %v1527, %v1549
        %v1558 = vadd.f32 %v1528, %v1550
        %v1559 = vadd.f32 %v1529, %v1551
        %v1560 = vadd.f32 %v1530, %v1552
        %v1561 = vadd.f32 %v1531, %v1553
        %v1562 = vadd.f32 %v1532, %v1554
        %v1563 = vld [vmem:[%s1533 + $0x1] sm:$0xff]
        %v1564 = vld [vmem:[%s1533 + $0x11] sm:$0xff]
        %v1565 = vld [vmem:[%s1533 + $0x21] sm:$0xff]
        %v1566 = vld [vmem:[%s1533 + $0x31] sm:$0xff]
        %v1567 = vld [vmem:[%s1533 + $0x41] sm:$0xff]
        %v1568 = vld [vmem:[%s1533 + $0x51] sm:$0xff]
        %v1569 = vld [vmem:[%s1533 + $0x61] sm:$0xff]
        %v1570 = vld [vmem:[%s1533 + $0x71] sm:$0xff]
        %v1571 = vld [vmem:[%s5 + $0x4] sm:$0x1]
        %v1572 = vlaneseq
        %v1573 = vshrl.u32 %v1572, 7
        %v1574 = vsub.s32 0, %v1573
        %v1575 = vrot.slane %v1571, %v1574
        %v1576 = vmul.f32 %v1563, %v1575
        %v1577 = vmul.f32 %v1564, %v1575
        %v1578 = vmul.f32 %v1565, %v1575
        %v1579 = vmul.f32 %v1566, %v1575
        %v1580 = vmul.f32 %v1567, %v1575
        %v1581 = vmul.f32 %v1568, %v1575
        %v1582 = vmul.f32 %v1569, %v1575
        %v1583 = vmul.f32 %v1570, %v1575
        %v1584 = vadd.f32 %v1555, %v1576
        %v1585 = vadd.f32 %v1556, %v1577
        %v1586 = vadd.f32 %v1557, %v1578
        %v1587 = vadd.f32 %v1558, %v1579
        %v1588 = vadd.f32 %v1559, %v1580
        %v1589 = vadd.f32 %v1560, %v1581
        %v1590 = vadd.f32 %v1561, %v1582
        %v1591 = vadd.f32 %v1562, %v1583
        %v1592 = vld [vmem:[%s1533 + $0x2] sm:$0xff]
        %v1593 = vld [vmem:[%s1533 + $0x12] sm:$0xff]
        %v1594 = vld [vmem:[%s1533 + $0x22] sm:$0xff]
        %v1595 = vld [vmem:[%s1533 + $0x32] sm:$0xff]
        %v1596 = vld [vmem:[%s1533 + $0x42] sm:$0xff]
        %v1597 = vld [vmem:[%s1533 + $0x52] sm:$0xff]
        %v1598 = vld [vmem:[%s1533 + $0x62] sm:$0xff]
        %v1599 = vld [vmem:[%s1533 + $0x72] sm:$0xff]
        %v1600 = vld [vmem:[%s5 + $0x5] sm:$0x1]
        %v1601 = vlaneseq
        %v1602 = vshrl.u32 %v1601, 7
        %v1603 = vsub.s32 0, %v1602
        %v1604 = vrot.slane %v1600, %v1603
        %v1605 = vmul.f32 %v1592, %v1604
        %v1606 = vmul.f32 %v1593, %v1604
        %v1607 = vmul.f32 %v1594, %v1604
        %v1608 = vmul.f32 %v1595, %v1604
        %v1609 = vmul.f32 %v1596, %v1604
        %v1610 = vmul.f32 %v1597, %v1604
        %v1611 = vmul.f32 %v1598, %v1604
        %v1612 = vmul.f32 %v1599, %v1604
        %v1613 = vadd.f32 %v1584, %v1605
        %v1614 = vadd.f32 %v1585, %v1606
        %v1615 = vadd.f32 %v1586, %v1607
        %v1616 = vadd.f32 %v1587, %v1608
        %v1617 = vadd.f32 %v1588, %v1609
        %v1618 = vadd.f32 %v1589, %v1610
        %v1619 = vadd.f32 %v1590, %v1611
        %v1620 = vadd.f32 %v1591, %v1612
        %s1621 = scalar_lea.vmem [#allocation4], 32
        %v1622 = vld [vmem:[%s1621] sm:$0xff]
        %v1623 = vld [vmem:[%s1621 + $0x10] sm:$0xff]
        %v1624 = vld [vmem:[%s1621 + $0x20] sm:$0xff]
        %v1625 = vld [vmem:[%s1621 + $0x30] sm:$0xff]
        %v1626 = vld [vmem:[%s1621 + $0x40] sm:$0xff]
        %v1627 = vld [vmem:[%s1621 + $0x50] sm:$0xff]
        %v1628 = vld [vmem:[%s1621 + $0x60] sm:$0xff]
        %v1629 = vld [vmem:[%s1621 + $0x70] sm:$0xff]
        %v1630 = vld [vmem:[%s5 + $0x6] sm:$0x1]
        %v1631 = vlaneseq
        %v1632 = vshrl.u32 %v1631, 7
        %v1633 = vsub.s32 0, %v1632
        %v1634 = vrot.slane %v1630, %v1633
        %v1635 = vmul.f32 %v1622, %v1634
        %v1636 = vmul.f32 %v1623, %v1634
        %v1637 = vmul.f32 %v1624, %v1634
        %v1638 = vmul.f32 %v1625, %v1634
        %v1639 = vmul.f32 %v1626, %v1634
        %v1640 = vmul.f32 %v1627, %v1634
        %v1641 = vmul.f32 %v1628, %v1634
        %v1642 = vmul.f32 %v1629, %v1634
        %v1643 = vadd.f32 %v1613, %v1635
        %v1644 = vadd.f32 %v1614, %v1636
        %v1645 = vadd.f32 %v1615, %v1637
        %v1646 = vadd.f32 %v1616, %v1638
        %v1647 = vadd.f32 %v1617, %v1639
        %v1648 = vadd.f32 %v1618, %v1640
        %v1649 = vadd.f32 %v1619, %v1641
        %v1650 = vadd.f32 %v1620, %v1642
        %v1651 = vld [vmem:[%s1621 + $0x1] sm:$0xff]
        %v1652 = vld [vmem:[%s1621 + $0x11] sm:$0xff]
        %v1653 = vld [vmem:[%s1621 + $0x21] sm:$0xff]
        %v1654 = vld [vmem:[%s1621 + $0x31] sm:$0xff]
        %v1655 = vld [vmem:[%s1621 + $0x41] sm:$0xff]
        %v1656 = vld [vmem:[%s1621 + $0x51] sm:$0xff]
        %v1657 = vld [vmem:[%s1621 + $0x61] sm:$0xff]
        %v1658 = vld [vmem:[%s1621 + $0x71] sm:$0xff]
        %v1659 = vld [vmem:[%s5 + $0x7] sm:$0x1]
        %v1660 = vlaneseq
        %v1661 = vshrl.u32 %v1660, 7
        %v1662 = vsub.s32 0, %v1661
        %v1663 = vrot.slane %v1659, %v1662
        %v1664 = vmul.f32 %v1651, %v1663
        %v1665 = vmul.f32 %v1652, %v1663
        %v1666 = vmul.f32 %v1653, %v1663
        %v1667 = vmul.f32 %v1654, %v1663
        %v1668 = vmul.f32 %v1655, %v1663
        %v1669 = vmul.f32 %v1656, %v1663
        %v1670 = vmul.f32 %v1657, %v1663
        %v1671 = vmul.f32 %v1658, %v1663
        %v1672 = vadd.f32 %v1643, %v1664
        %v1673 = vadd.f32 %v1644, %v1665
        %v1674 = vadd.f32 %v1645, %v1666
        %v1675 = vadd.f32 %v1646, %v1667
        %v1676 = vadd.f32 %v1647, %v1668
        %v1677 = vadd.f32 %v1648, %v1669
        %v1678 = vadd.f32 %v1649, %v1670
        %v1679 = vadd.f32 %v1650, %v1671
        %v1680 = vld [vmem:[%s1621 + $0x2] sm:$0xff]
        %v1681 = vld [vmem:[%s1621 + $0x12] sm:$0xff]
        %v1682 = vld [vmem:[%s1621 + $0x22] sm:$0xff]
        %v1683 = vld [vmem:[%s1621 + $0x32] sm:$0xff]
        %v1684 = vld [vmem:[%s1621 + $0x42] sm:$0xff]
        %v1685 = vld [vmem:[%s1621 + $0x52] sm:$0xff]
        %v1686 = vld [vmem:[%s1621 + $0x62] sm:$0xff]
        %v1687 = vld [vmem:[%s1621 + $0x72] sm:$0xff]
        %v1688 = vld [vmem:[%s5 + $0x8] sm:$0x1]
        %v1689 = vlaneseq
        %v1690 = vshrl.u32 %v1689, 7
        %v1691 = vsub.s32 0, %v1690
        %v1692 = vrot.slane %v1688, %v1691
        %v1693 = vmul.f32 %v1680, %v1692
        %v1694 = vmul.f32 %v1681, %v1692
        %v1695 = vmul.f32 %v1682, %v1692
        %v1696 = vmul.f32 %v1683, %v1692
        %v1697 = vmul.f32 %v1684, %v1692
        %v1698 = vmul.f32 %v1685, %v1692
        %v1699 = vmul.f32 %v1686, %v1692
        %v1700 = vmul.f32 %v1687, %v1692
        %v1701 = vadd.f32 %v1672, %v1693
        %v1702 = vadd.f32 %v1673, %v1694
        %v1703 = vadd.f32 %v1674, %v1695
        %v1704 = vadd.f32 %v1675, %v1696
        %v1705 = vadd.f32 %v1676, %v1697
        %v1706 = vadd.f32 %v1677, %v1698
        %v1707 = vadd.f32 %v1678, %v1699
        %v1708 = vadd.f32 %v1679, %v1700
        %v1709 = vld [vmem:[%s5 + $0x9] sm:$0x1]
        %v1710 = vlaneseq
        %v1711 = vshrl.u32 %v1710, 7
        %v1712 = vsub.s32 0, %v1711
        %v1713 = vrot.slane %v1709, %v1712
        %v1714 = vmul.f32 %v1701, %v1713
        %v1715 = vmul.f32 %v1702, %v1713
        %v1716 = vmul.f32 %v1703, %v1713
        %v1717 = vmul.f32 %v1704, %v1713
        %v1718 = vmul.f32 %v1705, %v1713
        %v1719 = vmul.f32 %v1706, %v1713
        %v1720 = vmul.f32 %v1707, %v1713
        %v1721 = vmul.f32 %v1708, %v1713
        %v1722 = vld [vmem:[%s5 + $0xa] sm:$0x1]
        %v1723 = vlaneseq
        %v1724 = vshrl.u32 %v1723, 7
        %v1725 = vsub.s32 0, %v1724
        %v1726 = vrot.slane %v1722, %v1725
        %v1727 = vadd.f32 %v1714, %v1726
        %v1728 = vadd.f32 %v1715, %v1726
        %v1729 = vadd.f32 %v1716, %v1726
        %v1730 = vadd.f32 %v1717, %v1726
        %v1731 = vadd.f32 %v1718, %v1726
        %v1732 = vadd.f32 %v1719, %v1726
        %v1733 = vadd.f32 %v1720, %v1726
        %v1734 = vadd.f32 %v1721, %v1726
        %v1735 = vmax.f32 %v1727, 0.0
        %v1736 = vmax.f32 %v1728, 0.0
        %v1737 = vmax.f32 %v1729, 0.0
        %v1738 = vmax.f32 %v1730, 0.0
        %v1739 = vmax.f32 %v1731, 0.0
        %v1740 = vmax.f32 %v1732, 0.0
        %v1741 = vmax.f32 %v1733, 0.0
        %v1742 = vmax.f32 %v1734, 0.0
        %v1743 = vld [vmem:[%s6] sm:$0xff]
        %v1745 = vsel %vm1434, %v1743, 0
        %v1748 = vsel %vm1434, %v1735, 0
        %v1751 = vsel %vm1434, %v1736, 0
        %v1754 = vsel %vm1434, %v1737, 0
        %v1757 = vsel %vm1434, %v1738, 0
        %v1760 = vsel %vm1434, %v1739, 0
        %v1763 = vsel %vm1434, %v1740, 0
        %v1766 = vsel %vm1434, %v1741, 0
        %v1769 = vsel %vm1434, %v1742, 0
        %1771 = vmatprep.subr.mxu0 0.0
        %1772 = vmatpush1.xpose.msra.mxu0 %v1748
        %1773 = vmatprep.subr.mxu0 0.0
        %1774 = vmatpush1.xpose.msra.mxu0 %v1751
        %1775 = vmatprep.subr.mxu0 0.0
        %1776 = vmatpush1.xpose.msra.mxu0 %v1754
        %1777 = vmatprep.subr.mxu0 0.0
        %1778 = vmatpush1.xpose.msra.mxu0 %v1757
        %1779 = vmatprep.subr.mxu0 0.0
        %1780 = vmatpush1.xpose.msra.mxu0 %v1760
        %1781 = vmatprep.subr.mxu0 0.0
        %1782 = vmatpush1.xpose.msra.mxu0 %v1763
        %1783 = vmatprep.subr.mxu0 0.0
        %1784 = vmatpush1.xpose.msra.mxu0 %v1766
        %1785 = vmatprep.subr.mxu0 0.0
        %1786 = vmatpush1.xpose.msra.mxu0 %v1769
        %1787 = vmatprep.subr.mxu0 0.0
        %1788 = vmatpush1.xpose.msra.mxu0 0.0
        %1789 = vmatprep.subr.mxu0 0.0
        %1790 = vmatpush1.xpose.msra.mxu0 0.0
        %1791 = vmatprep.subr.mxu0 0.0
        %1792 = vmatpush1.xpose.msra.mxu0 0.0
        %1793 = vmatprep.subr.mxu0 0.0
        %1794 = vmatpush1.xpose.msra.mxu0 0.0
        %1795 = vmatprep.subr.mxu0 0.0
        %1796 = vmatpush1.xpose.msra.mxu0 0.0
        %1797 = vmatprep.subr.mxu0 0.0
        %1798 = vmatpush1.xpose.msra.mxu0 0.0
        %1799 = vmatprep.subr.mxu0 0.0
        %1800 = vmatpush1.xpose.msra.mxu0 0.0
        %1801 = vmatprep.subr.mxu0 0.0
        %1802 = vmatpush1.xpose.msra.mxu0 0.0
        %1803 = vmatprep.subr.mxu0 0.0
        %1804 = vmatpush1.xpose.msra.mxu0 0.0
        %1805 = vmatprep.subr.mxu0 0.0
        %1806 = vmatpush1.xpose.msra.mxu0 0.0
        %1807 = vmatprep.subr.mxu0 0.0
        %1808 = vmatpush1.xpose.msra.mxu0 0.0
        %1809 = vmatprep.subr.mxu0 0.0
        %1810 = vmatpush1.xpose.msra.mxu0 0.0
        %1811 = vmatprep.subr.mxu0 0.0
        %1812 = vmatpush1.xpose.msra.mxu0 0.0
        %1813 = vmatprep.subr.mxu0 0.0
        %1814 = vmatpush1.xpose.msra.mxu0 0.0
        %1815 = vmatprep.subr.mxu0 0.0
        %1816 = vmatpush1.xpose.msra.mxu0 0.0
        %1817 = vmatprep.subr.mxu0 0.0
        %1818 = vmatpush1.xpose.msra.mxu0 0.0
        %1819 = vmatprep.subr.mxu0 0.0
        %1820 = vmatpush1.xpose.msra.mxu0 0.0
        %1821 = vmatprep.subr.mxu0 0.0
        %1822 = vmatpush1.xpose.msra.mxu0 0.0
        %1823 = vmatprep.subr.mxu0 0.0
        %1824 = vmatpush1.xpose.msra.mxu0 0.0
        %1825 = vmatprep.subr.mxu0 0.0
        %1826 = vmatpush1.xpose.msra.mxu0 0.0
        %1827 = vmatprep.subr.mxu0 0.0
        %1828 = vmatpush1.xpose.msra.mxu0 0.0
        %1829 = vmatprep.subr.mxu0 0.0
        %1830 = vmatpush1.xpose.msra.mxu0 0.0
        %1831 = vmatprep.subr.mxu0 0.0
        %1832 = vmatpush1.xpose.msra.mxu0 0.0
        %1833 = vmatprep.subr.mxu0 0.0
        %1834 = vmatpush1.xpose.msra.mxu0 0.0
        %1835 = vmatprep.mubr.f32.mxu0 0.0
        %1836 = vmatmul.mubr.f32.gmra.mrb[0].mxu0 %v1745
        %v1837 = vpop.f32.mrb[0].mxu0
        %v1838 = vadd.f32 0.0, %v1837
        %v1839 = vpop.f32.mrb[0].mxu0
        %1840 = vdwg.mxu0
        %v1841 = vld [vmem:[%s7] sm:$0xff]
        %1843 = vset.pattern.permute.xlu0 0
        %1844 = vperm.xlu0 %1843, %v1841
        %v1845 = vpop.permute.xlu0 %1844
        %v1847 = vmul.f32 %v1838, %v1845
        %1848 = vset.pattern.permute.xlu0 1
        %1849 = vperm.xlu0 %1848, %v1841
        %v1850 = vpop.permute.xlu0 %1849
        %v1852 = vadd.f32 %v1847, %v1850
        %v1853 = vmax.f32 %v1852, 0.0
        %vm1854 = vcmask 523264
        %1855 = vst.msk [vmem:[%s435] sm:$0xff] %vm1854, %v1853
        %s1856 = sand.u32 %s257, 1
        %s1857 = scalar_lea.sflag [#allocation6], %s1856
        %s1858 = sand.u32 %s257, 1
        %s1859 = smul.addr %s1858, 8
        %s1860 = scalar_lea.vmem [#allocation5], %s1859
        // Predicated region
        $region61: #{tpu_custom_call.1} parent=51 // pred_check
          %p1861 = pneg %p267
        $region62: #{tpu_custom_call.1} parent=51 // pred_check_branch
          %1863 = sbr.rel (%p1861) target = $region64
        $region63: #{tpu_custom_call.1} parent=51 // pred_region
          %s1865 = ssub.s32 128, 128
          %1866 = vsyncadd %s1857, %s1865
          %s1867 = sadd.s32 %s27, %s26
          %s1868 = smul.addr %s1867, 128
          %s1869 = scalar_lea.hbm %s8, %s1868
          %s1871 = sshll.u32 %s1860, 4
          %s1872 = int_to_ptr.vmem [resolvable:$true] %s1871
          %1874 = dma.vmem_to_hbm [thread:$0]  %s1872, 128, %s1869, %s1857
        $region64: #{tpu_custom_call.1} parent=51 // pred_fallthru
          _
      $region52: #{tpu_custom_call.1} parent=5 // pred_fallthru
        _
      %p1875 = scmp.le.s32.totalorder 2, %s17
      // Predicated region
      $region65: #{tpu_custom_call.1} parent=5 // pred_check
        %p1876 = pneg %p1875
      $region66: #{tpu_custom_call.1} parent=5 // pred_check_branch
        %1878 = sbr.rel (%p1876) target = $region68
      $region67: #{tpu_custom_call.1} parent=5 // pred_region
        %s1879 = ssub.s32 %s17, 2
        // Predicated region
        $region69: #{tpu_custom_call.1} parent=67 // pred_check
          %p1880 = pneg %p273
        $region70: #{tpu_custom_call.1} parent=67 // pred_check_branch
          %1882 = sbr.rel (%p1880) target = $region72
        $region71: #{tpu_custom_call.1} parent=67 // pred_region
          %s1883 = sand.u32 %s258, 1
          %s1884 = scalar_lea.sflag [#allocation6], %s1883
          %s1885 = sand.u32 %s258, 1
          %s1886 = smul.addr %s1885, 8
          %s1887 = scalar_lea.vmem [#allocation5], %s1886
          %1888 = dma.done %s1884, 128
        $region72: #{tpu_custom_call.1} parent=67 // pred_fallthru
          _
      $region68: #{tpu_custom_call.1} parent=5 // pred_fallthru
        _
    $region6: #{tpu_custom_call.1} parent=1 // loop_footer
      %s21 = sadd.s32 1, %s17
    $region7: #{tpu_custom_call.1} parent=1 // loop_footer_branch
      %16 = sbr.rel target = $region3
    $region8: #{tpu_custom_call.1} parent=1 // loop_exit
      _
    %1889 = vsyncpa [#allocation6], 1
    %s1890 = scalar_lea.sflag [#allocation6], 1
    %1891 = vsyncpa %s1890, 1

</llo_original>
